<compile_context>
chip_gen: v6e
topology: v6e:2x2x1
jax: 0.10.0
libtpu: 0.0.40
codegen_flags: <defaults>
</compile_context>

<pallas_src>
import jax
import jax.numpy as jnp
import numpy as np
from jax.experimental import pallas as pl
from jax.experimental.pallas import tpu as pltpu

BN_EPS = 1e-5


# --------------------------------------------------------------------------
# Fused kernel: all TIN layers + sum-pool readout for one batch tile
# --------------------------------------------------------------------------
def _make_fused_kernel(depth, tb, out_dim, compute_dtype):
    """Ref layout per grid step:
       [h0, A_1..A_depth, (w1,b1,w2,b2) x depth, P_0..P_{depth-1},
        Wp_0..Wp_depth, b_sum, out]"""

    def kernel(*refs):
        idx = 0
        h = refs[idx][...]; idx += 1                        # [tb*N0, Din] (compute dtype)
        a_refs = refs[idx: idx + depth]; idx += depth       # per-tile block-diag adjacencies
        w_refs = refs[idx: idx + 4 * depth]; idx += 4 * depth
        p_refs = refs[idx: idx + depth]; idx += depth       # per-tile sum-pool matrices
        wp_refs = refs[idx: idx + depth + 1]; idx += depth + 1
        bsum_ref = refs[idx]; idx += 1                      # [1, O] (f32)
        out_ref = refs[idx]                                 # [tb, O]

        acc = jnp.zeros((tb, out_dim), jnp.float32)
        for l in range(depth):
            # --- readout of h_rep[l]: per-batch sum-pool + prediction linear ---
            pooled_h = jnp.dot(p_refs[l][...], h,
                               preferred_element_type=jnp.float32)      # [tb, d_l]
            acc = acc + jnp.dot(pooled_h.astype(compute_dtype), wp_refs[l][...],
                                preferred_element_type=jnp.float32)
            # --- TIN layer l+1: spmm with per-tile block-diag adjacency + MLP ---
            pooled = jnp.dot(a_refs[l][...], h,
                             preferred_element_type=jnp.float32)        # [tb*n_{l+1}, d_l]
            w1, b1, w2, b2 = w_refs[4 * l: 4 * l + 4]
            z = jnp.dot(pooled.astype(compute_dtype), w1[...],
                        preferred_element_type=jnp.float32) + b1[...]   # f32 elementwise
            z = jnp.maximum(z, 0.0)
            z = jnp.dot(z.astype(compute_dtype), w2[...],
                        preferred_element_type=jnp.float32) + b2[...]
            h = jnp.maximum(z, 0.0).astype(compute_dtype)

        # Final readout term: the root layer has exactly one node per batch
        # element, so h is already [tb, H] (matches PyTorch's h.squeeze(1)).
        acc = acc + jnp.dot(h, wp_refs[depth][...],
                            preferred_element_type=jnp.float32)
        out_ref[...] = (acc + bsum_ref[...]).astype(out_ref.dtype)

    return kernel


def _fold_bn(w, b, g, beta, m, v):
    """Fold eval-mode BatchNorm (running stats) into a preceding x@w+b linear."""
    s = g * jax.lax.rsqrt(v + BN_EPS)          # [1, H]
    return w * s, (b - m) * s + beta


# --------------------------------------------------------------------------
# Full TINConv forward (batch-tiled grid, single pallas_call)
# --------------------------------------------------------------------------
def tin_forward(text_feature, adjs, layer_params, pred_params, depth,
                batch_tile=8, compute_dtype=jnp.bfloat16):
    assert depth >= 1
    B, N0, Din = text_feature.shape
    tb = min(batch_tile, B)
    assert B % tb == 0, "batch must be divisible by the batch tile"
    node_sizes = [N0] + [int(adjs[l].shape[0]) for l in range(1, depth + 1)]
    # Final readout term relies on the root layer having exactly one node
    # (matches the PyTorch semantics only in that case).
    assert node_sizes[depth] == 1, "root layer must have node_size == 1"
    H = layer_params[1]['w1'].shape[1]
    O = pred_params[0]['w'].shape[1]
    feat_dims = [Din] + [H] * depth
    num_tiles = B // tb
    cdt = compute_dtype

    # Batch-tiled input slab; MXU inputs in compute dtype.
    args = [text_feature.reshape(B * N0, Din).astype(cdt)]

    # Per-TILE block-diagonal adjacencies (O(tb^2 * n), shared by all grid steps).
    for l in range(1, depth + 1):
        a = jax.scipy.linalg.block_diag(*([adjs[l]] * tb))
        args.append(a.astype(cdt))

    # BN-folded MLP weights (linear1+BN1, linear2+outer-BN); biases stay f32.
    for l in range(1, depth + 1):
        p = layer_params[l]
        w1f, b1f = _fold_bn(p['w1'], p['b1'], p['g1'], p['be1'], p['m1'], p['v1'])
        w2f, b2f = _fold_bn(p['w2'], p['b2'], p['go'], p['bo'], p['mo'], p['vo'])
        args += [w1f.astype(cdt), b1f.astype(jnp.float32),
                 w2f.astype(cdt), b2f.astype(jnp.float32)]

    # Per-tile sum-pool matrices for the readout of layers 0..depth-1.
    for l in range(depth):
        args.append(jnp.kron(jnp.eye(tb, dtype=jnp.float32),
                             jnp.ones((1, node_sizes[l]), jnp.float32)).astype(cdt))

    # Per-layer prediction weights + summed biases ('sum' pooling path).
    for l in range(depth + 1):
        args.append(pred_params[l]['w'].astype(cdt))
    bsum = pred_params[0]['b'].astype(jnp.float32)
    for l in range(1, depth + 1):
        bsum = bsum + pred_params[l]['b'].astype(jnp.float32)
    args.append(bsum)

    # BlockSpecs: h0 / out tiled over batch; everything else constant
    # (constant index_map -> DMA'd once, never re-fetched across grid steps).
    in_specs = [pl.BlockSpec((tb * N0, Din), lambda i: (i, 0))]
    in_specs += [pl.BlockSpec(a.shape, lambda i: (0, 0)) for a in args[1:]]
    out_specs = pl.BlockSpec((tb, O), lambda i: (i, 0))

    # Advisory cost estimate for the XLA scheduler.
    flops = 0
    for l in range(depth):
        n_in, n_out, d_in = node_sizes[l], node_sizes[l + 1], feat_dims[l]
        flops += 2 * tb * (tb * n_in) * d_in                # per-tile readout pool dot
        flops += 2 * tb * d_in * O                          # readout linear l
        flops += 2 * (tb * n_out) * (tb * n_in) * d_in      # spmm (dense block-diag)
        flops += 2 * (tb * n_out) * d_in * H                # linear 1 (BN folded)
        flops += 2 * (tb * n_out) * H * H                   # linear 2 (BN folded)
    flops += 2 * tb * H * O                                 # readout of root layer
    flops *= num_tiles
    bytes_accessed = sum(int(np.prod(a.shape)) * a.dtype.itemsize for a in args)
    bytes_accessed += B * O * 4

    kernel = _make_fused_kernel(depth, tb, O, cdt)
    out = pl.pallas_call(
        kernel,
        out_shape=jax.ShapeDtypeStruct((B, O), jnp.float32),
        grid=(num_tiles,),
        in_specs=in_specs,
        out_specs=out_specs,
        compiler_params=pltpu.CompilerParams(dimension_semantics=("parallel",)),
        cost_estimate=pl.CostEstimate(flops=int(flops), transcendentals=0,
                                      bytes_accessed=int(bytes_accessed)),
    )(*args)
    return out


# --------------------------------------------------------------------------
# Pure-JAX reference (for correctness check)
# --------------------------------------------------------------------------
def ref_forward(x, adjs, layer_params, pred_params, depth):
    def bn(z, g, be, m, v):
        return (z - m) * jax.lax.rsqrt(v + BN_EPS) * g + be

    h = x
    h_rep = [h]
    for layer in range(1, depth + 1):
        p = layer_params[layer]
        pooled = jnp.einsum('cp,bpd->bcd', adjs[layer], h)
        z = pooled @ p['w1'] + p['b1']
        z = jnp.maximum(bn(z, p['g1'], p['be1'], p['m1'], p['v1']), 0.0)
        z = z @ p['w2'] + p['b2']
        h = jnp.maximum(bn(z, p['go'], p['bo'], p['mo'], p['vo']), 0.0)
        h_rep.append(h)
    logits = 0.0
    for layer in range(depth):
        pooled_h = jnp.sum(h_rep[layer], axis=1)
        logits = logits + pooled_h @ pred_params[layer]['w'] + pred_params[layer]['b']
    logits = logits + h_rep[depth][:, 0, :] @ pred_params[depth]['w'] + pred_params[depth]['b']
    return logits


# --------------------------------------------------------------------------
# Deterministic parameter construction
# --------------------------------------------------------------------------
def _dense(key, fan_in, fan_out):
    return (jax.random.normal(key, (fan_in, fan_out), jnp.float32)
            / np.sqrt(float(fan_in))).astype(jnp.float32)


def _bn_params(key, dim):
    k1, k2, k3, k4 = jax.random.split(key, 4)
    g = (1.0 + 0.1 * jax.random.normal(k1, (1, dim))).astype(jnp.float32)
    be = (0.1 * jax.random.normal(k2, (1, dim))).astype(jnp.float32)
    m = (0.1 * jax.random.normal(k3, (1, dim))).astype(jnp.float32)
    v = (0.5 + jax.random.uniform(k4, (1, dim))).astype(jnp.float32)
    return g, be, m, v


def make_layer_params(key, d_in, hdim):
    ks = jax.random.split(key, 6)
    g1, be1, m1, v1 = _bn_params(ks[2], hdim)
    go, bo, mo, vo = _bn_params(ks[5], hdim)
    return dict(
        w1=_dense(ks[0], d_in, hdim),
        b1=(0.05 * jax.random.normal(ks[1], (1, hdim))).astype(jnp.float32),
        g1=g1, be1=be1, m1=m1, v1=v1,
        w2=_dense(ks[3], hdim, hdim),
        b2=(0.05 * jax.random.normal(ks[4], (1, hdim))).astype(jnp.float32),
        go=go, bo=bo, mo=mo, vo=vo,
    )


def make_pred_params(key, d_in, d_out):
    k1, k2 = jax.random.split(key)
    return dict(w=_dense(k1, d_in, d_out),
                b=(0.05 * jax.random.normal(k2, (1, d_out))).astype(jnp.float32))


if __name__ == "__main__":
    key = jax.random.PRNGKey(0)
    B = 16
    tb = 8                           # batch tile -> grid=(2,), 8x-aligned sublanes
    depth = 2
    N0, N1, N2 = 8, 4, 1             # tree node_size per layer (leaves, internal, root)
    input_dim, hidden_dim, output_dim = 32, 32, 8

    # synthetic coding tree: each internal node pools 2 leaves, root pools all internals
    a1 = np.zeros((N1, N0), dtype=np.float32)
    for i in range(N1):
        a1[i, 2 * i] = 1.0
        a1[i, 2 * i + 1] = 1.0
    a2 = np.ones((N2, N1), dtype=np.float32)
    adjs = [None, jnp.asarray(a1), jnp.asarray(a2)]

    k_x, k_l1, k_l2, k_p0, k_p1, k_p2 = jax.random.split(key, 6)
    layer_params = [None,
                    make_layer_params(k_l1, input_dim, hidden_dim),
                    make_layer_params(k_l2, hidden_dim, hidden_dim)]
    pred_params = [make_pred_params(k_p0, input_dim, output_dim),
                   make_pred_params(k_p1, hidden_dim, output_dim),
                   make_pred_params(k_p2, hidden_dim, output_dim)]

    text_feature = jax.random.normal(k_x, (B, N0, input_dim), jnp.float32)

    fwd = jax.jit(tin_forward, static_argnums=(4, 5, 6))
    ref = ref_forward(text_feature, adjs, layer_params, pred_params, depth)

    # f32 path: tight check of kernel structure / BN folding / tiling
    out_f32 = fwd(text_feature, adjs, layer_params, pred_params, depth, tb, jnp.float32)
    out_f32 = jax.block_until_ready(out_f32)
    assert out_f32.shape == (B, output_dim), out_f32.shape
    np.testing.assert_allclose(np.asarray(out_f32), np.asarray(ref),
                               rtol=1e-4, atol=1e-4)

    # bf16-input / f32-accumulate path (MXU-native): looser tolerance
    out_bf16 = fwd(text_feature, adjs, layer_params, pred_params, depth, tb, jnp.bfloat16)
    out_bf16 = jax.block_until_ready(out_bf16)
    assert out_bf16.shape == (B, output_dim), out_bf16.shape
    np.testing.assert_allclose(np.asarray(out_bf16), np.asarray(ref),
                               rtol=5e-2, atol=1e-1)

    print("KERNEL_OK")
</pallas_src>

<mosaic_0001>
module attributes {stable_mosaic.version = 11 : i64} {
  func.func @kernel(%arg0: i32, %arg1: memref<64x32xf32, #tpu.memory_space<vmem>>, %arg2: memref<32x64xf32, #tpu.memory_space<vmem>>, %arg3: memref<8x32xf32, #tpu.memory_space<vmem>>, %arg4: memref<32x32xf32, #tpu.memory_space<vmem>>, %arg5: memref<1x32xf32, #tpu.memory_space<vmem>>, %arg6: memref<32x32xf32, #tpu.memory_space<vmem>>, %arg7: memref<1x32xf32, #tpu.memory_space<vmem>>, %arg8: memref<32x32xf32, #tpu.memory_space<vmem>>, %arg9: memref<1x32xf32, #tpu.memory_space<vmem>>, %arg10: memref<32x32xf32, #tpu.memory_space<vmem>>, %arg11: memref<1x32xf32, #tpu.memory_space<vmem>>, %arg12: memref<8x64xf32, #tpu.memory_space<vmem>>, %arg13: memref<8x32xf32, #tpu.memory_space<vmem>>, %arg14: memref<32x8xf32, #tpu.memory_space<vmem>>, %arg15: memref<32x8xf32, #tpu.memory_space<vmem>>, %arg16: memref<32x8xf32, #tpu.memory_space<vmem>>, %arg17: memref<1x8xf32, #tpu.memory_space<vmem>>, %arg18: memref<8x8xf32, #tpu.memory_space<vmem>>) attributes {dimension_semantics = [#tpu.dimension_semantics<parallel>], iteration_bounds = array<i64: 2>, scalar_prefetch = 0 : i64, scratch_operands = 0 : i64, tpu.core_type = #tpu.core_type<tc>, window_params = [{transform_indices = @transform_0, window_bounds = array<i64: 64, 32>}, {pipeline_mode = #tpu.pipeline_mode<synchronous>, transform_indices = @transform_1, window_bounds = array<i64: 32, 64>}, {pipeline_mode = #tpu.pipeline_mode<synchronous>, transform_indices = @transform_2, window_bounds = array<i64: 8, 32>}, {pipeline_mode = #tpu.pipeline_mode<synchronous>, transform_indices = @transform_3, window_bounds = array<i64: 32, 32>}, {pipeline_mode = #tpu.pipeline_mode<synchronous>, transform_indices = @transform_4, window_bounds = array<i64: 1, 32>}, {pipeline_mode = #tpu.pipeline_mode<synchronous>, transform_indices = @transform_5, window_bounds = array<i64: 32, 32>}, {pipeline_mode = #tpu.pipeline_mode<synchronous>, transform_indices = @transform_6, window_bounds = array<i64: 1, 32>}, {pipeline_mode = #tpu.pipeline_mode<synchronous>, transform_indices = @transform_7, window_bounds = array<i64: 32, 32>}, {pipeline_mode = #tpu.pipeline_mode<synchronous>, transform_indices = @transform_8, window_bounds = array<i64: 1, 32>}, {pipeline_mode = #tpu.pipeline_mode<synchronous>, transform_indices = @transform_9, window_bounds = array<i64: 32, 32>}, {pipeline_mode = #tpu.pipeline_mode<synchronous>, transform_indices = @transform_10, window_bounds = array<i64: 1, 32>}, {pipeline_mode = #tpu.pipeline_mode<synchronous>, transform_indices = @transform_11, window_bounds = array<i64: 8, 64>}, {pipeline_mode = #tpu.pipeline_mode<synchronous>, transform_indices = @transform_12, window_bounds = array<i64: 8, 32>}, {pipeline_mode = #tpu.pipeline_mode<synchronous>, transform_indices = @transform_13, window_bounds = array<i64: 32, 8>}, {pipeline_mode = #tpu.pipeline_mode<synchronous>, transform_indices = @transform_14, window_bounds = array<i64: 32, 8>}, {pipeline_mode = #tpu.pipeline_mode<synchronous>, transform_indices = @transform_15, window_bounds = array<i64: 32, 8>}, {pipeline_mode = #tpu.pipeline_mode<synchronous>, transform_indices = @transform_16, window_bounds = array<i64: 1, 8>}, {transform_indices = @transform_17, window_bounds = array<i64: 8, 8>}]} {
    %c0 = arith.constant 0 : index
    %c0_0 = arith.constant 0 : index
    %0 = vector.load %arg1[%c0, %c0_0] : memref<64x32xf32, #tpu.memory_space<vmem>>, vector<64x32xf32>
    %cst = arith.constant 0.000000e+00 : f32
    %1 = vector.broadcast %cst : f32 to vector<8x8xf32>
    %c0_1 = arith.constant 0 : index
    %c0_2 = arith.constant 0 : index
    %2 = vector.load %arg12[%c0_1, %c0_2] : memref<8x64xf32, #tpu.memory_space<vmem>>, vector<8x64xf32>
    %cst_3 = arith.constant dense<0.000000e+00> : vector<8x32xf32>
    %3 = tpu.matmul %2, %0, %cst_3 {dimension_numbers = #tpu.dot_dimension_numbers<[1], [0], [0], [1], [0, 0, 1, 1], [], []>} : vector<8x64xf32>, vector<64x32xf32>, vector<8x32xf32> -> vector<8x32xf32>
    %c0_4 = arith.constant 0 : index
    %c0_5 = arith.constant 0 : index
    %4 = vector.load %arg14[%c0_4, %c0_5] : memref<32x8xf32, #tpu.memory_space<vmem>>, vector<32x8xf32>
    %cst_6 = arith.constant dense<0.000000e+00> : vector<8x8xf32>
    %5 = tpu.matmul %3, %4, %cst_6 {dimension_numbers = #tpu.dot_dimension_numbers<[1], [0], [0], [1], [0, 0, 1, 1], [], []>} : vector<8x32xf32>, vector<32x8xf32>, vector<8x8xf32> -> vector<8x8xf32>
    %6 = arith.addf %1, %5 : vector<8x8xf32>
    %c0_7 = arith.constant 0 : index
    %c0_8 = arith.constant 0 : index
    %7 = vector.load %arg2[%c0_7, %c0_8] : memref<32x64xf32, #tpu.memory_space<vmem>>, vector<32x64xf32>
    %cst_9 = arith.constant dense<0.000000e+00> : vector<32x32xf32>
    %8 = tpu.matmul %7, %0, %cst_9 {dimension_numbers = #tpu.dot_dimension_numbers<[1], [0], [0], [1], [0, 0, 1, 1], [], []>} : vector<32x64xf32>, vector<64x32xf32>, vector<32x32xf32> -> vector<32x32xf32>
    %c0_10 = arith.constant 0 : index
    %c0_11 = arith.constant 0 : index
    %9 = vector.load %arg4[%c0_10, %c0_11] : memref<32x32xf32, #tpu.memory_space<vmem>>, vector<32x32xf32>
    %cst_12 = arith.constant dense<0.000000e+00> : vector<32x32xf32>
    %10 = tpu.matmul %8, %9, %cst_12 {dimension_numbers = #tpu.dot_dimension_numbers<[1], [0], [0], [1], [0, 0, 1, 1], [], []>} : vector<32x32xf32>, vector<32x32xf32>, vector<32x32xf32> -> vector<32x32xf32>
    %c0_13 = arith.constant 0 : index
    %c0_14 = arith.constant 0 : index
    %11 = vector.load %arg5[%c0_13, %c0_14] : memref<1x32xf32, #tpu.memory_space<vmem>>, vector<1x32xf32>
    %12 = vector.broadcast %11 : vector<1x32xf32> to vector<32x32xf32>
    %13 = arith.addf %10, %12 : vector<32x32xf32>
    %cst_15 = arith.constant 0.000000e+00 : f32
    %14 = vector.broadcast %cst_15 : f32 to vector<32x32xf32>
    %15 = arith.maximumf %13, %14 : vector<32x32xf32>
    %c0_16 = arith.constant 0 : index
    %c0_17 = arith.constant 0 : index
    %16 = vector.load %arg6[%c0_16, %c0_17] : memref<32x32xf32, #tpu.memory_space<vmem>>, vector<32x32xf32>
    %cst_18 = arith.constant dense<0.000000e+00> : vector<32x32xf32>
    %17 = tpu.matmul %15, %16, %cst_18 {dimension_numbers = #tpu.dot_dimension_numbers<[1], [0], [0], [1], [0, 0, 1, 1], [], []>} : vector<32x32xf32>, vector<32x32xf32>, vector<32x32xf32> -> vector<32x32xf32>
    %c0_19 = arith.constant 0 : index
    %c0_20 = arith.constant 0 : index
    %18 = vector.load %arg7[%c0_19, %c0_20] : memref<1x32xf32, #tpu.memory_space<vmem>>, vector<1x32xf32>
    %19 = vector.broadcast %18 : vector<1x32xf32> to vector<32x32xf32>
    %20 = arith.addf %17, %19 : vector<32x32xf32>
    %cst_21 = arith.constant 0.000000e+00 : f32
    %21 = vector.broadcast %cst_21 : f32 to vector<32x32xf32>
    %22 = arith.maximumf %20, %21 : vector<32x32xf32>
    %c0_22 = arith.constant 0 : index
    %c0_23 = arith.constant 0 : index
    %23 = vector.load %arg13[%c0_22, %c0_23] : memref<8x32xf32, #tpu.memory_space<vmem>>, vector<8x32xf32>
    %cst_24 = arith.constant dense<0.000000e+00> : vector<8x32xf32>
    %24 = tpu.matmul %23, %22, %cst_24 {dimension_numbers = #tpu.dot_dimension_numbers<[1], [0], [0], [1], [0, 0, 1, 1], [], []>} : vector<8x32xf32>, vector<32x32xf32>, vector<8x32xf32> -> vector<8x32xf32>
    %c0_25 = arith.constant 0 : index
    %c0_26 = arith.constant 0 : index
    %25 = vector.load %arg15[%c0_25, %c0_26] : memref<32x8xf32, #tpu.memory_space<vmem>>, vector<32x8xf32>
    %cst_27 = arith.constant dense<0.000000e+00> : vector<8x8xf32>
    %26 = tpu.matmul %24, %25, %cst_27 {dimension_numbers = #tpu.dot_dimension_numbers<[1], [0], [0], [1], [0, 0, 1, 1], [], []>} : vector<8x32xf32>, vector<32x8xf32>, vector<8x8xf32> -> vector<8x8xf32>
    %27 = arith.addf %6, %26 : vector<8x8xf32>
    %c0_28 = arith.constant 0 : index
    %c0_29 = arith.constant 0 : index
    %28 = vector.load %arg3[%c0_28, %c0_29] : memref<8x32xf32, #tpu.memory_space<vmem>>, vector<8x32xf32>
    %cst_30 = arith.constant dense<0.000000e+00> : vector<8x32xf32>
    %29 = tpu.matmul %28, %22, %cst_30 {dimension_numbers = #tpu.dot_dimension_numbers<[1], [0], [0], [1], [0, 0, 1, 1], [], []>} : vector<8x32xf32>, vector<32x32xf32>, vector<8x32xf32> -> vector<8x32xf32>
    %c0_31 = arith.constant 0 : index
    %c0_32 = arith.constant 0 : index
    %30 = vector.load %arg8[%c0_31, %c0_32] : memref<32x32xf32, #tpu.memory_space<vmem>>, vector<32x32xf32>
    %cst_33 = arith.constant dense<0.000000e+00> : vector<8x32xf32>
    %31 = tpu.matmul %29, %30, %cst_33 {dimension_numbers = #tpu.dot_dimension_numbers<[1], [0], [0], [1], [0, 0, 1, 1], [], []>} : vector<8x32xf32>, vector<32x32xf32>, vector<8x32xf32> -> vector<8x32xf32>
    %c0_34 = arith.constant 0 : index
    %c0_35 = arith.constant 0 : index
    %32 = vector.load %arg9[%c0_34, %c0_35] : memref<1x32xf32, #tpu.memory_space<vmem>>, vector<1x32xf32>
    %33 = vector.broadcast %32 : vector<1x32xf32> to vector<8x32xf32>
    %34 = arith.addf %31, %33 : vector<8x32xf32>
    %cst_36 = arith.constant 0.000000e+00 : f32
    %35 = vector.broadcast %cst_36 : f32 to vector<8x32xf32>
    %36 = arith.maximumf %34, %35 : vector<8x32xf32>
    %c0_37 = arith.constant 0 : index
    %c0_38 = arith.constant 0 : index
    %37 = vector.load %arg10[%c0_37, %c0_38] : memref<32x32xf32, #tpu.memory_space<vmem>>, vector<32x32xf32>
    %cst_39 = arith.constant dense<0.000000e+00> : vector<8x32xf32>
    %38 = tpu.matmul %36, %37, %cst_39 {dimension_numbers = #tpu.dot_dimension_numbers<[1], [0], [0], [1], [0, 0, 1, 1], [], []>} : vector<8x32xf32>, vector<32x32xf32>, vector<8x32xf32> -> vector<8x32xf32>
    %c0_40 = arith.constant 0 : index
    %c0_41 = arith.constant 0 : index
    %39 = vector.load %arg11[%c0_40, %c0_41] : memref<1x32xf32, #tpu.memory_space<vmem>>, vector<1x32xf32>
    %40 = vector.broadcast %39 : vector<1x32xf32> to vector<8x32xf32>
    %41 = arith.addf %38, %40 : vector<8x32xf32>
    %cst_42 = arith.constant 0.000000e+00 : f32
    %42 = vector.broadcast %cst_42 : f32 to vector<8x32xf32>
    %43 = arith.maximumf %41, %42 : vector<8x32xf32>
    %c0_43 = arith.constant 0 : index
    %c0_44 = arith.constant 0 : index
    %44 = vector.load %arg16[%c0_43, %c0_44] : memref<32x8xf32, #tpu.memory_space<vmem>>, vector<32x8xf32>
    %cst_45 = arith.constant dense<0.000000e+00> : vector<8x8xf32>
    %45 = tpu.matmul %43, %44, %cst_45 {dimension_numbers = #tpu.dot_dimension_numbers<[1], [0], [0], [1], [0, 0, 1, 1], [], []>} : vector<8x32xf32>, vector<32x8xf32>, vector<8x8xf32> -> vector<8x8xf32>
    %46 = arith.addf %27, %45 : vector<8x8xf32>
    %c0_46 = arith.constant 0 : index
    %c0_47 = arith.constant 0 : index
    %47 = vector.load %arg17[%c0_46, %c0_47] : memref<1x8xf32, #tpu.memory_space<vmem>>, vector<1x8xf32>
    %48 = vector.broadcast %47 : vector<1x8xf32> to vector<8x8xf32>
    %49 = arith.addf %46, %48 : vector<8x8xf32>
    %c0_48 = arith.constant 0 : index
    %c0_49 = arith.constant 0 : index
    %50 = vector.load %arg18[%c0_48, %c0_49] : memref<8x8xf32, #tpu.memory_space<vmem>>, vector<8x8xf32>
    tpu.vector_store %arg18[%c0_48, %c0_49], %49 {strides = array<i32>} : memref<8x8xf32, #tpu.memory_space<vmem>>, vector<8x8xf32>,
    return
  }
  func.func @transform_0(%arg0: i32) -> (i32, i32) {
    %c0_i32 = arith.constant 0 : i32
    %c0_i32_0 = arith.constant 0 : i32
    return %arg0, %c0_i32 : i32, i32
  }
  func.func @transform_1(%arg0: i32) -> (i32, i32) {
    %c0_i32 = arith.constant 0 : i32
    %c0_i32_0 = arith.constant 0 : i32
    %c0_i32_1 = arith.constant 0 : i32
    return %c0_i32, %c0_i32_0 : i32, i32
  }
  func.func @transform_2(%arg0: i32) -> (i32, i32) {
    %c0_i32 = arith.constant 0 : i32
    %c0_i32_0 = arith.constant 0 : i32
    %c0_i32_1 = arith.constant 0 : i32
    return %c0_i32, %c0_i32_0 : i32, i32
  }
  func.func @transform_3(%arg0: i32) -> (i32, i32) {
    %c0_i32 = arith.constant 0 : i32
    %c0_i32_0 = arith.constant 0 : i32
    %c0_i32_1 = arith.constant 0 : i32
    return %c0_i32, %c0_i32_0 : i32, i32
  }
  func.func @transform_4(%arg0: i32) -> (i32, i32) {
    %c0_i32 = arith.constant 0 : i32
    %c0_i32_0 = arith.constant 0 : i32
    %c0_i32_1 = arith.constant 0 : i32
    return %c0_i32, %c0_i32_0 : i32, i32
  }
  func.func @transform_5(%arg0: i32) -> (i32, i32) {
    %c0_i32 = arith.constant 0 : i32
    %c0_i32_0 = arith.constant 0 : i32
    %c0_i32_1 = arith.constant 0 : i32
    return %c0_i32, %c0_i32_0 : i32, i32
  }
  func.func @transform_6(%arg0: i32) -> (i32, i32) {
    %c0_i32 = arith.constant 0 : i32
    %c0_i32_0 = arith.constant 0 : i32
    %c0_i32_1 = arith.constant 0 : i32
    return %c0_i32, %c0_i32_0 : i32, i32
  }
  func.func @transform_7(%arg0: i32) -> (i32, i32) {
    %c0_i32 = arith.constant 0 : i32
    %c0_i32_0 = arith.constant 0 : i32
    %c0_i32_1 = arith.constant 0 : i32
    return %c0_i32, %c0_i32_0 : i32, i32
  }
  func.func @transform_8(%arg0: i32) -> (i32, i32) {
    %c0_i32 = arith.constant 0 : i32
    %c0_i32_0 = arith.constant 0 : i32
    %c0_i32_1 = arith.constant 0 : i32
    return %c0_i32, %c0_i32_0 : i32, i32
  }
  func.func @transform_9(%arg0: i32) -> (i32, i32) {
    %c0_i32 = arith.constant 0 : i32
    %c0_i32_0 = arith.constant 0 : i32
    %c0_i32_1 = arith.constant 0 : i32
    return %c0_i32, %c0_i32_0 : i32, i32
  }
  func.func @transform_10(%arg0: i32) -> (i32, i32) {
    %c0_i32 = arith.constant 0 : i32
    %c0_i32_0 = arith.constant 0 : i32
    %c0_i32_1 = arith.constant 0 : i32
    return %c0_i32, %c0_i32_0 : i32, i32
  }
  func.func @transform_11(%arg0: i32) -> (i32, i32) {
    %c0_i32 = arith.constant 0 : i32
    %c0_i32_0 = arith.constant 0 : i32
    %c0_i32_1 = arith.constant 0 : i32
    return %c0_i32, %c0_i32_0 : i32, i32
  }
  func.func @transform_12(%arg0: i32) -> (i32, i32) {
    %c0_i32 = arith.constant 0 : i32
    %c0_i32_0 = arith.constant 0 : i32
    %c0_i32_1 = arith.constant 0 : i32
    return %c0_i32, %c0_i32_0 : i32, i32
  }
  func.func @transform_13(%arg0: i32) -> (i32, i32) {
    %c0_i32 = arith.constant 0 : i32
    %c0_i32_0 = arith.constant 0 : i32
    %c0_i32_1 = arith.constant 0 : i32
    return %c0_i32, %c0_i32_0 : i32, i32
  }
  func.func @transform_14(%arg0: i32) -> (i32, i32) {
    %c0_i32 = arith.constant 0 : i32
    %c0_i32_0 = arith.constant 0 : i32
    %c0_i32_1 = arith.constant 0 : i32
    return %c0_i32, %c0_i32_0 : i32, i32
  }
  func.func @transform_15(%arg0: i32) -> (i32, i32) {
    %c0_i32 = arith.constant 0 : i32
    %c0_i32_0 = arith.constant 0 : i32
    %c0_i32_1 = arith.constant 0 : i32
    return %c0_i32, %c0_i32_0 : i32, i32
  }
  func.func @transform_16(%arg0: i32) -> (i32, i32) {
    %c0_i32 = arith.constant 0 : i32
    %c0_i32_0 = arith.constant 0 : i32
    %c0_i32_1 = arith.constant 0 : i32
    return %c0_i32, %c0_i32_0 : i32, i32
  }
  func.func @transform_17(%arg0: i32) -> (i32, i32) {
    %c0_i32 = arith.constant 0 : i32
    %c0_i32_0 = arith.constant 0 : i32
    return %arg0, %c0_i32 : i32, i32
  }
}

</mosaic_0001>

<llo_original>
// kernel: tin_forward.1
$region0: #{tin_forward.1}
  #allocation0 [shape = 'u32[]', space=smem, size = 0x4, offset = 0x4, fixed_abs, tag = 'smem constant byte address 0x4 - core index']
  #allocation1 [shape = 'u32[144,128]{1,0:T(1,128)}', space=vmem, size = 0x12000, scoped, tag = 'internal scratch']
  %s0 = inlined_call_operand.vmem [shape: f32[128,32], index: 0, kind: input, shape index: {}]
  %s1 = inlined_call_operand.vmem [shape: f32[32,64], index: 1, kind: input, shape index: {}]
  %s2 = inlined_call_operand.vmem [shape: f32[8,32], index: 2, kind: input, shape index: {}]
  %s3 = inlined_call_operand.vmem [shape: f32[32,32], index: 3, kind: input, shape index: {}]
  %s4 = inlined_call_operand.vmem [shape: f32[1,32], index: 4, kind: input, shape index: {}]
  %s5 = inlined_call_operand.vmem [shape: f32[32,32], index: 5, kind: input, shape index: {}]
  %s6 = inlined_call_operand.vmem [shape: f32[1,32], index: 6, kind: input, shape index: {}]
  %s7 = inlined_call_operand.vmem [shape: f32[32,32], index: 7, kind: input, shape index: {}]
  %s8 = inlined_call_operand.vmem [shape: f32[1,32], index: 8, kind: input, shape index: {}]
  %s9 = inlined_call_operand.vmem [shape: f32[32,32], index: 9, kind: input, shape index: {}]
  %s10 = inlined_call_operand.vmem [shape: f32[1,32], index: 10, kind: input, shape index: {}]
  %s11 = inlined_call_operand.vmem [shape: f32[8,64], index: 11, kind: input, shape index: {}]
  %s12 = inlined_call_operand.vmem [shape: f32[8,32], index: 12, kind: input, shape index: {}]
  %s13 = inlined_call_operand.vmem [shape: f32[32,8], index: 13, kind: input, shape index: {}]
  %s14 = inlined_call_operand.vmem [shape: f32[32,8], index: 14, kind: input, shape index: {}]
  %s15 = inlined_call_operand.vmem [shape: f32[32,8], index: 15, kind: input, shape index: {}]
  %s16 = inlined_call_operand.vmem [shape: f32[1,8], index: 16, kind: input, shape index: {}]
  %s17 = inlined_call_operand.vmem [shape: f32[16,8], index: 17, kind: output, shape index: {}]
  %s18 = sld [smem:[#allocation0]]
  $region101: #{tin_forward.1} parent=0
    _
  %s20 = ssub.s32 1, %s18
  %s21 = scalar_select 0, %s20, %s18
  loop: start=0, step=1, limit=4
  $region2: #{tin_forward.1} parent=0 // loop_pre_header
    _
  $region3: #{tin_forward.1} parent=0 // loop_header
    %s23 = sphi 0, %s27
    %p24 = scmp.ge.s32.totalorder %s23, 4
    %s33 = sphi 0, %s35
    %s36 = sphi 0, %s33
    %s37 = sphi 0, %s36
    %s53 = sphi 0, %s37
    %s57 = sphi 0, %s57
    %s59 = sphi 0, %s57
    %s60 = sphi 0, %s59
    %s74 = sphi 0, %s60
    %s78 = sphi 0, %s78
    %s80 = sphi 0, %s78
    %s81 = sphi 0, %s80
    %s95 = sphi 0, %s81
    %s99 = sphi 0, %s99
    %s101 = sphi 0, %s99
    %s102 = sphi 0, %s101
    %s116 = sphi 0, %s102
    %s120 = sphi 0, %s120
    %s122 = sphi 0, %s120
    %s123 = sphi 0, %s122
    %s137 = sphi 0, %s123
    %s141 = sphi 0, %s141
    %s143 = sphi 0, %s141
    %s144 = sphi 0, %s143
    %s158 = sphi 0, %s144
    %s162 = sphi 0, %s162
    %s164 = sphi 0, %s162
    %s165 = sphi 0, %s164
    %s179 = sphi 0, %s165
    %s183 = sphi 0, %s183
    %s185 = sphi 0, %s183
    %s186 = sphi 0, %s185
    %s200 = sphi 0, %s186
    %s204 = sphi 0, %s204
    %s206 = sphi 0, %s204
    %s207 = sphi 0, %s206
    %s221 = sphi 0, %s207
    %s225 = sphi 0, %s225
    %s227 = sphi 0, %s225
    %s228 = sphi 0, %s227
    %s242 = sphi 0, %s228
    %s246 = sphi 0, %s246
    %s248 = sphi 0, %s246
    %s249 = sphi 0, %s248
    %s263 = sphi 0, %s249
    %s267 = sphi 0, %s267
    %s269 = sphi 0, %s267
    %s270 = sphi 0, %s269
    %s284 = sphi 0, %s270
    %s288 = sphi 0, %s288
    %s290 = sphi 0, %s288
    %s291 = sphi 0, %s290
    %s305 = sphi 0, %s291
    %s309 = sphi 0, %s309
    %s311 = sphi 0, %s309
    %s312 = sphi 0, %s311
    %s326 = sphi 0, %s312
    %s330 = sphi 0, %s330
    %s332 = sphi 0, %s330
    %s333 = sphi 0, %s332
    %s347 = sphi 0, %s333
    %s351 = sphi 0, %s351
    %s353 = sphi 0, %s351
    %s354 = sphi 0, %s353
    %s368 = sphi 0, %s354
    %s372 = sphi 0, %s372
    %s374 = sphi 0, %s372
    %s375 = sphi 0, %s374
    %s389 = sphi 0, %s375
    %s395 = sphi 0, %s397
    %s398 = sphi 0, %s395
    %s399 = sphi 0, %s398
    %s415 = sphi 0, %s399
  $region4: #{tin_forward.1} parent=0 // loop_header_branch
    %26 = sbr.rel (%p24) target = $region8
  $region5: #{tin_forward.1} parent=0 // loop_body
    %s28 = ssub.s32 %s23, 1
    %s29 = ssub.s32 %s23, 2
    %s30 = sadd.s32 %s23, 1
    %s31 = ssub.s32 %s23, %s30
    %p32 = scmp.eq.s32.totalorder %s31, 0
    %s34 = sadd.s32 %s33, 1
    %s35 = scalar_select %p32, %s33, %s34
    %p38 = pneg %p32
    %p39 = scmp.eq.s32.totalorder %s23, 1
    %p40 = por %p38, %p39
    %p41 = scmp.ne.s32.totalorder %s33, %s36
    %p42 = scmp.eq.s32.totalorder %s23, 0
    %p43 = por %p41, %p42
    %p44 = scmp.ne.s32.totalorder %s33, %s36
    %p45 = scmp.eq.s32.totalorder %s28, 1
    %p46 = por %p44, %p45
    %p47 = scmp.ne.s32.totalorder %s36, %s37
    %p48 = scmp.eq.s32.totalorder %s28, 0
    %p49 = por %p47, %p48
    %p50 = scmp.ne.s32.totalorder %s36, %s37
    %p51 = scmp.eq.s32.totalorder %s29, 1
    %p52 = por %p50, %p51
    %p54 = scmp.ne.s32.totalorder %s37, %s53
    %p55 = scmp.eq.s32.totalorder %s29, 0
    %p56 = por %p54, %p55
    %s58 = sadd.s32 %s57, 1
    %p61 = scmp.eq.s32.totalorder %s23, 1
    %p62 = scmp.ne.s32.totalorder %s57, %s59
    %p63 = scmp.eq.s32.totalorder %s23, 0
    %p64 = por %p62, %p63
    %p65 = scmp.ne.s32.totalorder %s57, %s59
    %p66 = scmp.eq.s32.totalorder %s28, 1
    %p67 = por %p65, %p66
    %p68 = scmp.ne.s32.totalorder %s59, %s60
    %p69 = scmp.eq.s32.totalorder %s28, 0
    %p70 = por %p68, %p69
    %p71 = scmp.ne.s32.totalorder %s59, %s60
    %p72 = scmp.eq.s32.totalorder %s29, 1
    %p73 = por %p71, %p72
    %p75 = scmp.ne.s32.totalorder %s60, %s74
    %p76 = scmp.eq.s32.totalorder %s29, 0
    %p77 = por %p75, %p76
    %s79 = sadd.s32 %s78, 1
    %p82 = scmp.eq.s32.totalorder %s23, 1
    %p83 = scmp.ne.s32.totalorder %s78, %s80
    %p84 = scmp.eq.s32.totalorder %s23, 0
    %p85 = por %p83, %p84
    %p86 = scmp.ne.s32.totalorder %s78, %s80
    %p87 = scmp.eq.s32.totalorder %s28, 1
    %p88 = por %p86, %p87
    %p89 = scmp.ne.s32.totalorder %s80, %s81
    %p90 = scmp.eq.s32.totalorder %s28, 0
    %p91 = por %p89, %p90
    %p92 = scmp.ne.s32.totalorder %s80, %s81
    %p93 = scmp.eq.s32.totalorder %s29, 1
    %p94 = por %p92, %p93
    %p96 = scmp.ne.s32.totalorder %s81, %s95
    %p97 = scmp.eq.s32.totalorder %s29, 0
    %p98 = por %p96, %p97
    %s100 = sadd.s32 %s99, 1
    %p103 = scmp.eq.s32.totalorder %s23, 1
    %p104 = scmp.ne.s32.totalorder %s99, %s101
    %p105 = scmp.eq.s32.totalorder %s23, 0
    %p106 = por %p104, %p105
    %p107 = scmp.ne.s32.totalorder %s99, %s101
    %p108 = scmp.eq.s32.totalorder %s28, 1
    %p109 = por %p107, %p108
    %p110 = scmp.ne.s32.totalorder %s101, %s102
    %p111 = scmp.eq.s32.totalorder %s28, 0
    %p112 = por %p110, %p111
    %p113 = scmp.ne.s32.totalorder %s101, %s102
    %p114 = scmp.eq.s32.totalorder %s29, 1
    %p115 = por %p113, %p114
    %p117 = scmp.ne.s32.totalorder %s102, %s116
    %p118 = scmp.eq.s32.totalorder %s29, 0
    %p119 = por %p117, %p118
    %s121 = sadd.s32 %s120, 1
    %p124 = scmp.eq.s32.totalorder %s23, 1
    %p125 = scmp.ne.s32.totalorder %s120, %s122
    %p126 = scmp.eq.s32.totalorder %s23, 0
    %p127 = por %p125, %p126
    %p128 = scmp.ne.s32.totalorder %s120, %s122
    %p129 = scmp.eq.s32.totalorder %s28, 1
    %p130 = por %p128, %p129
    %p131 = scmp.ne.s32.totalorder %s122, %s123
    %p132 = scmp.eq.s32.totalorder %s28, 0
    %p133 = por %p131, %p132
    %p134 = scmp.ne.s32.totalorder %s122, %s123
    %p135 = scmp.eq.s32.totalorder %s29, 1
    %p136 = por %p134, %p135
    %p138 = scmp.ne.s32.totalorder %s123, %s137
    %p139 = scmp.eq.s32.totalorder %s29, 0
    %p140 = por %p138, %p139
    %s142 = sadd.s32 %s141, 1
    %p145 = scmp.eq.s32.totalorder %s23, 1
    %p146 = scmp.ne.s32.totalorder %s141, %s143
    %p147 = scmp.eq.s32.totalorder %s23, 0
    %p148 = por %p146, %p147
    %p149 = scmp.ne.s32.totalorder %s141, %s143
    %p150 = scmp.eq.s32.totalorder %s28, 1
    %p151 = por %p149, %p150
    %p152 = scmp.ne.s32.totalorder %s143, %s144
    %p153 = scmp.eq.s32.totalorder %s28, 0
    %p154 = por %p152, %p153
    %p155 = scmp.ne.s32.totalorder %s143, %s144
    %p156 = scmp.eq.s32.totalorder %s29, 1
    %p157 = por %p155, %p156
    %p159 = scmp.ne.s32.totalorder %s144, %s158
    %p160 = scmp.eq.s32.totalorder %s29, 0
    %p161 = por %p159, %p160
    %s163 = sadd.s32 %s162, 1
    %p166 = scmp.eq.s32.totalorder %s23, 1
    %p167 = scmp.ne.s32.totalorder %s162, %s164
    %p168 = scmp.eq.s32.totalorder %s23, 0
    %p169 = por %p167, %p168
    %p170 = scmp.ne.s32.totalorder %s162, %s164
    %p171 = scmp.eq.s32.totalorder %s28, 1
    %p172 = por %p170, %p171
    %p173 = scmp.ne.s32.totalorder %s164, %s165
    %p174 = scmp.eq.s32.totalorder %s28, 0
    %p175 = por %p173, %p174
    %p176 = scmp.ne.s32.totalorder %s164, %s165
    %p177 = scmp.eq.s32.totalorder %s29, 1
    %p178 = por %p176, %p177
    %p180 = scmp.ne.s32.totalorder %s165, %s179
    %p181 = scmp.eq.s32.totalorder %s29, 0
    %p182 = por %p180, %p181
    %s184 = sadd.s32 %s183, 1
    %p187 = scmp.eq.s32.totalorder %s23, 1
    %p188 = scmp.ne.s32.totalorder %s183, %s185
    %p189 = scmp.eq.s32.totalorder %s23, 0
    %p190 = por %p188, %p189
    %p191 = scmp.ne.s32.totalorder %s183, %s185
    %p192 = scmp.eq.s32.totalorder %s28, 1
    %p193 = por %p191, %p192
    %p194 = scmp.ne.s32.totalorder %s185, %s186
    %p195 = scmp.eq.s32.totalorder %s28, 0
    %p196 = por %p194, %p195
    %p197 = scmp.ne.s32.totalorder %s185, %s186
    %p198 = scmp.eq.s32.totalorder %s29, 1
    %p199 = por %p197, %p198
    %p201 = scmp.ne.s32.totalorder %s186, %s200
    %p202 = scmp.eq.s32.totalorder %s29, 0
    %p203 = por %p201, %p202
    %s205 = sadd.s32 %s204, 1
    %p208 = scmp.eq.s32.totalorder %s23, 1
    %p209 = scmp.ne.s32.totalorder %s204, %s206
    %p210 = scmp.eq.s32.totalorder %s23, 0
    %p211 = por %p209, %p210
    %p212 = scmp.ne.s32.totalorder %s204, %s206
    %p213 = scmp.eq.s32.totalorder %s28, 1
    %p214 = por %p212, %p213
    %p215 = scmp.ne.s32.totalorder %s206, %s207
    %p216 = scmp.eq.s32.totalorder %s28, 0
    %p217 = por %p215, %p216
    %p218 = scmp.ne.s32.totalorder %s206, %s207
    %p219 = scmp.eq.s32.totalorder %s29, 1
    %p220 = por %p218, %p219
    %p222 = scmp.ne.s32.totalorder %s207, %s221
    %p223 = scmp.eq.s32.totalorder %s29, 0
    %p224 = por %p222, %p223
    %s226 = sadd.s32 %s225, 1
    %p229 = scmp.eq.s32.totalorder %s23, 1
    %p230 = scmp.ne.s32.totalorder %s225, %s227
    %p231 = scmp.eq.s32.totalorder %s23, 0
    %p232 = por %p230, %p231
    %p233 = scmp.ne.s32.totalorder %s225, %s227
    %p234 = scmp.eq.s32.totalorder %s28, 1
    %p235 = por %p233, %p234
    %p236 = scmp.ne.s32.totalorder %s227, %s228
    %p237 = scmp.eq.s32.totalorder %s28, 0
    %p238 = por %p236, %p237
    %p239 = scmp.ne.s32.totalorder %s227, %s228
    %p240 = scmp.eq.s32.totalorder %s29, 1
    %p241 = por %p239, %p240
    %p243 = scmp.ne.s32.totalorder %s228, %s242
    %p244 = scmp.eq.s32.totalorder %s29, 0
    %p245 = por %p243, %p244
    %s247 = sadd.s32 %s246, 1
    %p250 = scmp.eq.s32.totalorder %s23, 1
    %p251 = scmp.ne.s32.totalorder %s246, %s248
    %p252 = scmp.eq.s32.totalorder %s23, 0
    %p253 = por %p251, %p252
    %p254 = scmp.ne.s32.totalorder %s246, %s248
    %p255 = scmp.eq.s32.totalorder %s28, 1
    %p256 = por %p254, %p255
    %p257 = scmp.ne.s32.totalorder %s248, %s249
    %p258 = scmp.eq.s32.totalorder %s28, 0
    %p259 = por %p257, %p258
    %p260 = scmp.ne.s32.totalorder %s248, %s249
    %p261 = scmp.eq.s32.totalorder %s29, 1
    %p262 = por %p260, %p261
    %p264 = scmp.ne.s32.totalorder %s249, %s263
    %p265 = scmp.eq.s32.totalorder %s29, 0
    %p266 = por %p264, %p265
    %s268 = sadd.s32 %s267, 1
    %p271 = scmp.eq.s32.totalorder %s23, 1
    %p272 = scmp.ne.s32.totalorder %s267, %s269
    %p273 = scmp.eq.s32.totalorder %s23, 0
    %p274 = por %p272, %p273
    %p275 = scmp.ne.s32.totalorder %s267, %s269
    %p276 = scmp.eq.s32.totalorder %s28, 1
    %p277 = por %p275, %p276
    %p278 = scmp.ne.s32.totalorder %s269, %s270
    %p279 = scmp.eq.s32.totalorder %s28, 0
    %p280 = por %p278, %p279
    %p281 = scmp.ne.s32.totalorder %s269, %s270
    %p282 = scmp.eq.s32.totalorder %s29, 1
    %p283 = por %p281, %p282
    %p285 = scmp.ne.s32.totalorder %s270, %s284
    %p286 = scmp.eq.s32.totalorder %s29, 0
    %p287 = por %p285, %p286
    %s289 = sadd.s32 %s288, 1
    %p292 = scmp.eq.s32.totalorder %s23, 1
    %p293 = scmp.ne.s32.totalorder %s288, %s290
    %p294 = scmp.eq.s32.totalorder %s23, 0
    %p295 = por %p293, %p294
    %p296 = scmp.ne.s32.totalorder %s288, %s290
    %p297 = scmp.eq.s32.totalorder %s28, 1
    %p298 = por %p296, %p297
    %p299 = scmp.ne.s32.totalorder %s290, %s291
    %p300 = scmp.eq.s32.totalorder %s28, 0
    %p301 = por %p299, %p300
    %p302 = scmp.ne.s32.totalorder %s290, %s291
    %p303 = scmp.eq.s32.totalorder %s29, 1
    %p304 = por %p302, %p303
    %p306 = scmp.ne.s32.totalorder %s291, %s305
    %p307 = scmp.eq.s32.totalorder %s29, 0
    %p308 = por %p306, %p307
    %s310 = sadd.s32 %s309, 1
    %p313 = scmp.eq.s32.totalorder %s23, 1
    %p314 = scmp.ne.s32.totalorder %s309, %s311
    %p315 = scmp.eq.s32.totalorder %s23, 0
    %p316 = por %p314, %p315
    %p317 = scmp.ne.s32.totalorder %s309, %s311
    %p318 = scmp.eq.s32.totalorder %s28, 1
    %p319 = por %p317, %p318
    %p320 = scmp.ne.s32.totalorder %s311, %s312
    %p321 = scmp.eq.s32.totalorder %s28, 0
    %p322 = por %p320, %p321
    %p323 = scmp.ne.s32.totalorder %s311, %s312
    %p324 = scmp.eq.s32.totalorder %s29, 1
    %p325 = por %p323, %p324
    %p327 = scmp.ne.s32.totalorder %s312, %s326
    %p328 = scmp.eq.s32.totalorder %s29, 0
    %p329 = por %p327, %p328
    %s331 = sadd.s32 %s330, 1
    %p334 = scmp.eq.s32.totalorder %s23, 1
    %p335 = scmp.ne.s32.totalorder %s330, %s332
    %p336 = scmp.eq.s32.totalorder %s23, 0
    %p337 = por %p335, %p336
    %p338 = scmp.ne.s32.totalorder %s330, %s332
    %p339 = scmp.eq.s32.totalorder %s28, 1
    %p340 = por %p338, %p339
    %p341 = scmp.ne.s32.totalorder %s332, %s333
    %p342 = scmp.eq.s32.totalorder %s28, 0
    %p343 = por %p341, %p342
    %p344 = scmp.ne.s32.totalorder %s332, %s333
    %p345 = scmp.eq.s32.totalorder %s29, 1
    %p346 = por %p344, %p345
    %p348 = scmp.ne.s32.totalorder %s333, %s347
    %p349 = scmp.eq.s32.totalorder %s29, 0
    %p350 = por %p348, %p349
    %s352 = sadd.s32 %s351, 1
    %p355 = scmp.eq.s32.totalorder %s23, 1
    %p356 = scmp.ne.s32.totalorder %s351, %s353
    %p357 = scmp.eq.s32.totalorder %s23, 0
    %p358 = por %p356, %p357
    %p359 = scmp.ne.s32.totalorder %s351, %s353
    %p360 = scmp.eq.s32.totalorder %s28, 1
    %p361 = por %p359, %p360
    %p362 = scmp.ne.s32.totalorder %s353, %s354
    %p363 = scmp.eq.s32.totalorder %s28, 0
    %p364 = por %p362, %p363
    %p365 = scmp.ne.s32.totalorder %s353, %s354
    %p366 = scmp.eq.s32.totalorder %s29, 1
    %p367 = por %p365, %p366
    %p369 = scmp.ne.s32.totalorder %s354, %s368
    %p370 = scmp.eq.s32.totalorder %s29, 0
    %p371 = por %p369, %p370
    %s373 = sadd.s32 %s372, 1
    %p376 = scmp.eq.s32.totalorder %s23, 1
    %p377 = scmp.ne.s32.totalorder %s372, %s374
    %p378 = scmp.eq.s32.totalorder %s23, 0
    %p379 = por %p377, %p378
    %p380 = scmp.ne.s32.totalorder %s372, %s374
    %p381 = scmp.eq.s32.totalorder %s28, 1
    %p382 = por %p380, %p381
    %p383 = scmp.ne.s32.totalorder %s374, %s375
    %p384 = scmp.eq.s32.totalorder %s28, 0
    %p385 = por %p383, %p384
    %p386 = scmp.ne.s32.totalorder %s374, %s375
    %p387 = scmp.eq.s32.totalorder %s29, 1
    %p388 = por %p386, %p387
    %p390 = scmp.ne.s32.totalorder %s375, %s389
    %p391 = scmp.eq.s32.totalorder %s29, 0
    %p392 = por %p390, %p391
    %s393 = ssub.s32 %s23, %s30
    %p394 = scmp.eq.s32.totalorder %s393, 0
    %s396 = sadd.s32 %s395, 1
    %s397 = scalar_select %p394, %s395, %s396
    %p400 = pneg %p394
    %p401 = scmp.eq.s32.totalorder %s23, 1
    %p402 = por %p400, %p401
    %p403 = scmp.ne.s32.totalorder %s395, %s398
    %p404 = scmp.eq.s32.totalorder %s23, 0
    %p405 = por %p403, %p404
    %p406 = scmp.ne.s32.totalorder %s395, %s398
    %p407 = scmp.eq.s32.totalorder %s28, 1
    %p408 = por %p406, %p407
    %p409 = scmp.ne.s32.totalorder %s398, %s399
    %p410 = scmp.eq.s32.totalorder %s28, 0
    %p411 = por %p409, %p410
    %p412 = scmp.ne.s32.totalorder %s398, %s399
    %p413 = scmp.eq.s32.totalorder %s29, 1
    %p414 = por %p412, %p413
    %p416 = scmp.ne.s32.totalorder %s399, %s415
    %p417 = scmp.eq.s32.totalorder %s29, 0
    %p418 = por %p416, %p417
    %p419 = scmp.le.s32.totalorder 1, %s23
    %p420 = scmp.lt.s32.totalorder %s23, 3
    %p421 = pnand %p419, %p420
    %p422 = pneg %p421
    // Predicated region
    $region9: #{tin_forward.1} parent=5 // pred_check
      _
    $region10: #{tin_forward.1} parent=5 // pred_check_branch
      %424 = sbr.rel (%p421) target = $region12
    $region11: #{tin_forward.1} parent=5 // pred_region
      %s425 = ssub.s32 %s23, 1
      // Predicated region
      $region13: #{tin_forward.1} parent=11 // pred_check
        %p426 = pneg %p70
      $region14: #{tin_forward.1} parent=11 // pred_check_branch
        %428 = sbr.rel (%p426) target = $region16
      $region15: #{tin_forward.1} parent=11 // pred_region
        _
      $region16: #{tin_forward.1} parent=11 // pred_fallthru
        _
      // Predicated region
      $region17: #{tin_forward.1} parent=11 // pred_check
        %p429 = pneg %p91
      $region18: #{tin_forward.1} parent=11 // pred_check_branch
        %431 = sbr.rel (%p429) target = $region20
      $region19: #{tin_forward.1} parent=11 // pred_region
        _
      $region20: #{tin_forward.1} parent=11 // pred_fallthru
        _
      // Predicated region
      $region21: #{tin_forward.1} parent=11 // pred_check
        %p432 = pneg %p112
      $region22: #{tin_forward.1} parent=11 // pred_check_branch
        %434 = sbr.rel (%p432) target = $region24
      $region23: #{tin_forward.1} parent=11 // pred_region
        _
      $region24: #{tin_forward.1} parent=11 // pred_fallthru
        _
      // Predicated region
      $region25: #{tin_forward.1} parent=11 // pred_check
        %p435 = pneg %p133
      $region26: #{tin_forward.1} parent=11 // pred_check_branch
        %437 = sbr.rel (%p435) target = $region28
      $region27: #{tin_forward.1} parent=11 // pred_region
        _
      $region28: #{tin_forward.1} parent=11 // pred_fallthru
        _
      // Predicated region
      $region29: #{tin_forward.1} parent=11 // pred_check
        %p438 = pneg %p154
      $region30: #{tin_forward.1} parent=11 // pred_check_branch
        %440 = sbr.rel (%p438) target = $region32
      $region31: #{tin_forward.1} parent=11 // pred_region
        _
      $region32: #{tin_forward.1} parent=11 // pred_fallthru
        _
      // Predicated region
      $region33: #{tin_forward.1} parent=11 // pred_check
        %p441 = pneg %p175
      $region34: #{tin_forward.1} parent=11 // pred_check_branch
        %443 = sbr.rel (%p441) target = $region36
      $region35: #{tin_forward.1} parent=11 // pred_region
        _
      $region36: #{tin_forward.1} parent=11 // pred_fallthru
        _
      // Predicated region
      $region37: #{tin_forward.1} parent=11 // pred_check
        %p444 = pneg %p196
      $region38: #{tin_forward.1} parent=11 // pred_check_branch
        %446 = sbr.rel (%p444) target = $region40
      $region39: #{tin_forward.1} parent=11 // pred_region
        _
      $region40: #{tin_forward.1} parent=11 // pred_fallthru
        _
      // Predicated region
      $region41: #{tin_forward.1} parent=11 // pred_check
        %p447 = pneg %p217
      $region42: #{tin_forward.1} parent=11 // pred_check_branch
        %449 = sbr.rel (%p447) target = $region44
      $region43: #{tin_forward.1} parent=11 // pred_region
        _
      $region44: #{tin_forward.1} parent=11 // pred_fallthru
        _
      // Predicated region
      $region45: #{tin_forward.1} parent=11 // pred_check
        %p450 = pneg %p238
      $region46: #{tin_forward.1} parent=11 // pred_check_branch
        %452 = sbr.rel (%p450) target = $region48
      $region47: #{tin_forward.1} parent=11 // pred_region
        _
      $region48: #{tin_forward.1} parent=11 // pred_fallthru
        _
      // Predicated region
      $region49: #{tin_forward.1} parent=11 // pred_check
        %p453 = pneg %p259
      $region50: #{tin_forward.1} parent=11 // pred_check_branch
        %455 = sbr.rel (%p453) target = $region52
      $region51: #{tin_forward.1} parent=11 // pred_region
        _
      $region52: #{tin_forward.1} parent=11 // pred_fallthru
        _
      // Predicated region
      $region53: #{tin_forward.1} parent=11 // pred_check
        %p456 = pneg %p280
      $region54: #{tin_forward.1} parent=11 // pred_check_branch
        %458 = sbr.rel (%p456) target = $region56
      $region55: #{tin_forward.1} parent=11 // pred_region
        _
      $region56: #{tin_forward.1} parent=11 // pred_fallthru
        _
      // Predicated region
      $region57: #{tin_forward.1} parent=11 // pred_check
        %p459 = pneg %p301
      $region58: #{tin_forward.1} parent=11 // pred_check_branch
        %461 = sbr.rel (%p459) target = $region60
      $region59: #{tin_forward.1} parent=11 // pred_region
        _
      $region60: #{tin_forward.1} parent=11 // pred_fallthru
        _
      // Predicated region
      $region61: #{tin_forward.1} parent=11 // pred_check
        %p462 = pneg %p322
      $region62: #{tin_forward.1} parent=11 // pred_check_branch
        %464 = sbr.rel (%p462) target = $region64
      $region63: #{tin_forward.1} parent=11 // pred_region
        _
      $region64: #{tin_forward.1} parent=11 // pred_fallthru
        _
      // Predicated region
      $region65: #{tin_forward.1} parent=11 // pred_check
        %p465 = pneg %p343
      $region66: #{tin_forward.1} parent=11 // pred_check_branch
        %467 = sbr.rel (%p465) target = $region68
      $region67: #{tin_forward.1} parent=11 // pred_region
        _
      $region68: #{tin_forward.1} parent=11 // pred_fallthru
        _
      // Predicated region
      $region69: #{tin_forward.1} parent=11 // pred_check
        %p468 = pneg %p364
      $region70: #{tin_forward.1} parent=11 // pred_check_branch
        %470 = sbr.rel (%p468) target = $region72
      $region71: #{tin_forward.1} parent=11 // pred_region
        _
      $region72: #{tin_forward.1} parent=11 // pred_fallthru
        _
      // Predicated region
      $region73: #{tin_forward.1} parent=11 // pred_check
        %p471 = pneg %p385
      $region74: #{tin_forward.1} parent=11 // pred_check_branch
        %473 = sbr.rel (%p471) target = $region76
      $region75: #{tin_forward.1} parent=11 // pred_region
        _
      $region76: #{tin_forward.1} parent=11 // pred_fallthru
        _
    $region12: #{tin_forward.1} parent=5 // pred_fallthru
      _
    %p474 = scmp.lt.s32.totalorder %s23, 2
    // Predicated region
    $region77: #{tin_forward.1} parent=5 // pred_check
      %p475 = pneg %p474
    $region78: #{tin_forward.1} parent=5 // pred_check_branch
      %477 = sbr.rel (%p475) target = $region80
    $region79: #{tin_forward.1} parent=5 // pred_region
      // Predicated region
      $region81: #{tin_forward.1} parent=79 // pred_check
        %p478 = pneg %p43
      $region82: #{tin_forward.1} parent=79 // pred_check_branch
        %480 = sbr.rel (%p478) target = $region84
      $region83: #{tin_forward.1} parent=79 // pred_region
        %s481 = smul.u32 8, %s23
        %p482 = scmp.lt.s32.totalorder %s481, 15
        %s483 = scalar_select %p482, %s481, 15
        %s484 = smul.addr %s483, 8
        %s485 = scalar_lea.vmem %s0, %s484
        %s486 = smul.u32 8, %s23
      $region84: #{tin_forward.1} parent=79 // pred_fallthru
        _
    $region80: #{tin_forward.1} parent=5 // pred_fallthru
      _
    %p487 = scmp.le.s32.totalorder 1, %s23
    %p488 = scmp.lt.s32.totalorder %s23, 3
    %p489 = pnand %p487, %p488
    %p490 = pneg %p489
    // Predicated region
    $region85: #{tin_forward.1} parent=5 // pred_check
      _
    $region86: #{tin_forward.1} parent=5 // pred_check_branch
      %492 = sbr.rel (%p489) target = $region88
    $region87: #{tin_forward.1} parent=5 // pred_region
      %s493 = ssub.s32 %s23, 1
      %s494 = smul.u32 8, %s28
      %p495 = scmp.lt.s32.totalorder %s494, 15
      %s496 = scalar_select %p495, %s494, 15
      %s497 = smul.addr %s496, 8
      %s498 = scalar_lea.vmem %s0, %s497
      %p499 = pneg %p49
      %p500 = pneg %p46
      %p501 = pneg %p70
      %p502 = pneg %p67
      %p503 = pneg %p91
      %p504 = pneg %p88
      %p505 = pneg %p112
      %p506 = pneg %p109
      %p507 = pneg %p133
      %p508 = pneg %p130
      %p509 = pneg %p154
      %p510 = pneg %p151
      %p511 = pneg %p175
      %p512 = pneg %p172
      %p513 = pneg %p196
      %p514 = pneg %p193
      %p515 = pneg %p217
      %p516 = pneg %p214
      %p517 = pneg %p238
      %p518 = pneg %p235
      %p519 = pneg %p259
      %p520 = pneg %p256
      %p521 = pneg %p280
      %p522 = pneg %p277
      %p523 = pneg %p301
      %p524 = pneg %p298
      %p525 = pneg %p322
      %p526 = pneg %p319
      %p527 = pneg %p343
      %p528 = pneg %p340
      %p529 = pneg %p364
      %p530 = pneg %p361
      %p531 = pneg %p385
      %p532 = pneg %p382
      %p533 = pneg %p411
      %p534 = pneg %p408
      %p535 = scmp.lt.s32.totalorder %s28, 1
      %s536 = scalar_select %p535, %s28, 1
      %s537 = smul.addr %s536, 8
      %s538 = scalar_lea.vmem %s17, %s537
      %s539 = smul.u32 8, %s28
      %p540 = scmp.lt.s32.totalorder %s539, 15
      %s541 = scalar_select %p540, %s539, 15
      %s542 = smul.addr %s541, 8
      %s543 = scalar_lea.vmem %s0, %s542
      %s544 = smul.u32 8, %s28
      %p545 = scmp.lt.s32.totalorder %s28, 1
      %s546 = scalar_select %p545, %s28, 1
      %s547 = smul.addr %s546, 8
      %s548 = scalar_lea.vmem %s17, %s547
      %v549 = vld [vmem:[%s543] sm:$0xff]
      %v550 = vld [vmem:[%s543 + $0x8] sm:$0xff]
      %v551 = vld [vmem:[%s543 + $0x10] sm:$0xff]
      %v552 = vld [vmem:[%s543 + $0x18] sm:$0xff]
      %v553 = vld [vmem:[%s543 + $0x20] sm:$0xff]
      %v554 = vld [vmem:[%s543 + $0x28] sm:$0xff]
      %v555 = vld [vmem:[%s543 + $0x30] sm:$0xff]
      %v556 = vld [vmem:[%s543 + $0x38] sm:$0xff]
      %v557 = vld [vmem:[%s11] sm:$0xff]
      %vm558 = vcmask 523264
      %v560 = vsel %vm558, %v557, 0
      %562 = vmatprep.subr.mxu0 0.0
      %563 = vmatpush1.msra.mxu0 0.0
      %564 = vmatprep.subr.mxu0 0.0
      %565 = vmatpush1.msra.mxu0 0.0
      %566 = vmatprep.subr.mxu0 0.0
      %567 = vmatpush1.msra.mxu0 0.0
      %568 = vmatprep.subr.mxu0 0.0
      %569 = vmatpush1.msra.mxu0 0.0
      %570 = vmatprep.subr.mxu0 0.0
      %571 = vmatpush1.msra.mxu0 0.0
      %572 = vmatprep.subr.mxu0 0.0
      %573 = vmatpush1.msra.mxu0 0.0
      %574 = vmatprep.subr.mxu0 0.0
      %575 = vmatpush1.msra.mxu0 0.0
      %576 = vmatprep.subr.mxu0 0.0
      %577 = vmatpush1.msra.mxu0 0.0
      %578 = vmatprep.subr.mxu0 0.0
      %579 = vmatpush1.msra.mxu0 %v556
      %580 = vmatprep.subr.mxu0 0.0
      %581 = vmatpush1.msra.mxu0 %v555
      %582 = vmatprep.subr.mxu0 0.0
      %583 = vmatpush1.msra.mxu0 %v554
      %584 = vmatprep.subr.mxu0 0.0
      %585 = vmatpush1.msra.mxu0 %v553
      %586 = vmatprep.subr.mxu0 0.0
      %587 = vmatpush1.msra.mxu0 %v552
      %588 = vmatprep.subr.mxu0 0.0
      %589 = vmatpush1.msra.mxu0 %v551
      %590 = vmatprep.subr.mxu0 0.0
      %591 = vmatpush1.msra.mxu0 %v550
      %592 = vmatprep.subr.mxu0 0.0
      %593 = vmatpush1.msra.mxu0 %v549
      %594 = vmatprep.subr.mxu0 0.0
      %595 = vmatpush2.msra.mxu0 0.0
      %596 = vmatprep.subr.mxu0 0.0
      %597 = vmatpush2.msra.mxu0 0.0
      %598 = vmatprep.subr.mxu0 0.0
      %599 = vmatpush2.msra.mxu0 0.0
      %600 = vmatprep.subr.mxu0 0.0
      %601 = vmatpush2.msra.mxu0 0.0
      %602 = vmatprep.subr.mxu0 0.0
      %603 = vmatpush2.msra.mxu0 0.0
      %604 = vmatprep.subr.mxu0 0.0
      %605 = vmatpush2.msra.mxu0 0.0
      %606 = vmatprep.subr.mxu0 0.0
      %607 = vmatpush2.msra.mxu0 0.0
      %608 = vmatprep.subr.mxu0 0.0
      %609 = vmatpush2.msra.mxu0 0.0
      %610 = vmatprep.subr.mxu0 0.0
      %611 = vmatpush2.msra.mxu0 0.0
      %612 = vmatprep.subr.mxu0 0.0
      %613 = vmatpush2.msra.mxu0 0.0
      %614 = vmatprep.subr.mxu0 0.0
      %615 = vmatpush2.msra.mxu0 0.0
      %616 = vmatprep.subr.mxu0 0.0
      %617 = vmatpush2.msra.mxu0 0.0
      %618 = vmatprep.subr.mxu0 0.0
      %619 = vmatpush2.msra.mxu0 0.0
      %620 = vmatprep.subr.mxu0 0.0
      %621 = vmatpush2.msra.mxu0 0.0
      %622 = vmatprep.subr.mxu0 0.0
      %623 = vmatpush2.msra.mxu0 0.0
      %624 = vmatprep.subr.mxu0 0.0
      %625 = vmatpush2.msra.mxu0 0.0
      %626 = vmatprep.mubr.f32.mxu0 0.0
      %627 = vmatmul.mubr.f32.gmra.mxu0 %v560
      %v628 = vpop.f32.mrf.mxu0
      %v629 = vadd.f32 0.0, %v628
      %v630 = vpop.f32.mrf.mxu0
      %631 = vdwg.mxu0
      %v632 = vld [vmem:[%s13] sm:$0xff]
      %v633 = vld [vmem:[%s13 + $0x8] sm:$0xff]
      %v634 = vld [vmem:[%s13 + $0x10] sm:$0xff]
      %v635 = vld [vmem:[%s13 + $0x18] sm:$0xff]
      %v636 = vld [vmem:[%s1] sm:$0xff]
      %v637 = vld [vmem:[%s1 + $0x8] sm:$0xff]
      %v638 = vld [vmem:[%s1 + $0x10] sm:$0xff]
      %v639 = vld [vmem:[%s1 + $0x18] sm:$0xff]
      %v641 = vsel %vm558, %v636, 0
      %v644 = vsel %vm558, %v637, 0
      %v647 = vsel %vm558, %v638, 0
      %v650 = vsel %vm558, %v639, 0
      %652 = vmatprep.subr.mxu0 0.0
      %653 = vmatpush1.msra.mxu0 0.0
      %654 = vmatprep.subr.mxu0 0.0
      %655 = vmatpush1.msra.mxu0 0.0
      %656 = vmatprep.subr.mxu0 0.0
      %657 = vmatpush1.msra.mxu0 0.0
      %658 = vmatprep.subr.mxu0 0.0
      %659 = vmatpush1.msra.mxu0 0.0
      %660 = vmatprep.subr.mxu0 0.0
      %661 = vmatpush1.msra.mxu0 0.0
      %662 = vmatprep.subr.mxu0 0.0
      %663 = vmatpush1.msra.mxu0 0.0
      %664 = vmatprep.subr.mxu0 0.0
      %665 = vmatpush1.msra.mxu0 0.0
      %666 = vmatprep.subr.mxu0 0.0
      %667 = vmatpush1.msra.mxu0 0.0
      %668 = vmatprep.subr.mxu0 0.0
      %669 = vmatpush1.msra.mxu0 %v556
      %670 = vmatprep.subr.mxu0 0.0
      %671 = vmatpush1.msra.mxu0 %v555
      %672 = vmatprep.subr.mxu0 0.0
      %673 = vmatpush1.msra.mxu0 %v554
      %674 = vmatprep.subr.mxu0 0.0
      %675 = vmatpush1.msra.mxu0 %v553
      %676 = vmatprep.subr.mxu0 0.0
      %677 = vmatpush1.msra.mxu0 %v552
      %678 = vmatprep.subr.mxu0 0.0
      %679 = vmatpush1.msra.mxu0 %v551
      %680 = vmatprep.subr.mxu0 0.0
      %681 = vmatpush1.msra.mxu0 %v550
      %682 = vmatprep.subr.mxu0 0.0
      %683 = vmatpush1.msra.mxu0 %v549
      %684 = vmatprep.subr.mxu0 0.0
      %685 = vmatpush2.msra.mxu0 0.0
      %686 = vmatprep.subr.mxu0 0.0
      %687 = vmatpush2.msra.mxu0 0.0
      %688 = vmatprep.subr.mxu0 0.0
      %689 = vmatpush2.msra.mxu0 0.0
      %690 = vmatprep.subr.mxu0 0.0
      %691 = vmatpush2.msra.mxu0 0.0
      %692 = vmatprep.subr.mxu0 0.0
      %693 = vmatpush2.msra.mxu0 0.0
      %694 = vmatprep.subr.mxu0 0.0
      %695 = vmatpush2.msra.mxu0 0.0
      %696 = vmatprep.subr.mxu0 0.0
      %697 = vmatpush2.msra.mxu0 0.0
      %698 = vmatprep.subr.mxu0 0.0
      %699 = vmatpush2.msra.mxu0 0.0
      %700 = vmatprep.subr.mxu0 0.0
      %701 = vmatpush2.msra.mxu0 0.0
      %702 = vmatprep.subr.mxu0 0.0
      %703 = vmatpush2.msra.mxu0 0.0
      %704 = vmatprep.subr.mxu0 0.0
      %705 = vmatpush2.msra.mxu0 0.0
      %706 = vmatprep.subr.mxu0 0.0
      %707 = vmatpush2.msra.mxu0 0.0
      %708 = vmatprep.subr.mxu0 0.0
      %709 = vmatpush2.msra.mxu0 0.0
      %710 = vmatprep.subr.mxu0 0.0
      %711 = vmatpush2.msra.mxu0 0.0
      %712 = vmatprep.subr.mxu0 0.0
      %713 = vmatpush2.msra.mxu0 0.0
      %714 = vmatprep.subr.mxu0 0.0
      %715 = vmatpush2.msra.mxu0 0.0
      %716 = vmatprep.mubr.f32.mxu0 0.0
      %717 = vmatmul.mubr.f32.gmra.mxu0 %v641
      %v718 = vpop.f32.mrf.mxu0
      %v719 = vadd.f32 0.0, %v718
      %v720 = vpop.f32.mrf.mxu0
      %721 = vmatprep.mubr.f32.mxu0 0.0
      %722 = vmatmul.mubr.f32.gmra.mxu0 %v644
      %v723 = vpop.f32.mrf.mxu0
      %v724 = vadd.f32 0.0, %v723
      %v725 = vpop.f32.mrf.mxu0
      %726 = vmatprep.mubr.f32.mxu0 0.0
      %727 = vmatmul.mubr.f32.gmra.mxu0 %v647
      %v728 = vpop.f32.mrf.mxu0
      %v729 = vadd.f32 0.0, %v728
      %v730 = vpop.f32.mrf.mxu0
      %731 = vmatprep.mubr.f32.mxu0 0.0
      %732 = vmatmul.mubr.f32.gmra.mxu0 %v650
      %v733 = vpop.f32.mrf.mxu0
      %v734 = vadd.f32 0.0, %v733
      %v735 = vpop.f32.mrf.mxu0
      %736 = vdwg.mxu0
      %v737 = vld [vmem:[%s3] sm:$0xff]
      %v738 = vld [vmem:[%s3 + $0x8] sm:$0xff]
      %v739 = vld [vmem:[%s3 + $0x10] sm:$0xff]
      %v740 = vld [vmem:[%s3 + $0x18] sm:$0xff]
      %v741 = vld [vmem:[%s4] sm:$0x1]
      %v743 = vlaneseq
      %v744 = vshrl.u32 %v743, 7
      %v745 = vsub.s32 0, %v744
      %v746 = vrot.slane %v741, %v745
      %vm748 = vcmask 261120
      %v750 = vsel %vm748, %v719, 0
      %v753 = vsel %vm748, %v724, 0
      %v756 = vsel %vm748, %v729, 0
      %v759 = vsel %vm748, %v734, 0
      %761 = vmatprep.subr.mxu0 0.0
      %762 = vmatpush1.msra.mxu0 0.0
      %763 = vmatprep.subr.mxu0 0.0
      %764 = vmatpush1.msra.mxu0 0.0
      %765 = vmatprep.subr.mxu0 0.0
      %766 = vmatpush1.msra.mxu0 0.0
      %767 = vmatprep.subr.mxu0 0.0
      %768 = vmatpush1.msra.mxu0 0.0
      %769 = vmatprep.subr.mxu0 0.0
      %770 = vmatpush1.msra.mxu0 0.0
      %771 = vmatprep.subr.mxu0 0.0
      %772 = vmatpush1.msra.mxu0 0.0
      %773 = vmatprep.subr.mxu0 0.0
      %774 = vmatpush1.msra.mxu0 0.0
      %775 = vmatprep.subr.mxu0 0.0
      %776 = vmatpush1.msra.mxu0 0.0
      %777 = vmatprep.subr.mxu0 0.0
      %778 = vmatpush1.msra.mxu0 0.0
      %779 = vmatprep.subr.mxu0 0.0
      %780 = vmatpush1.msra.mxu0 0.0
      %781 = vmatprep.subr.mxu0 0.0
      %782 = vmatpush1.msra.mxu0 0.0
      %783 = vmatprep.subr.mxu0 0.0
      %784 = vmatpush1.msra.mxu0 0.0
      %785 = vmatprep.subr.mxu0 0.0
      %786 = vmatpush1.msra.mxu0 %v740
      %787 = vmatprep.subr.mxu0 0.0
      %788 = vmatpush1.msra.mxu0 %v739
      %789 = vmatprep.subr.mxu0 0.0
      %790 = vmatpush1.msra.mxu0 %v738
      %791 = vmatprep.subr.mxu0 0.0
      %792 = vmatpush1.msra.mxu0 %v737
      %793 = vmatprep.subr.mxu0 0.0
      %794 = vmatpush2.msra.mxu0 0.0
      %795 = vmatprep.subr.mxu0 0.0
      %796 = vmatpush2.msra.mxu0 0.0
      %797 = vmatprep.subr.mxu0 0.0
      %798 = vmatpush2.msra.mxu0 0.0
      %799 = vmatprep.subr.mxu0 0.0
      %800 = vmatpush2.msra.mxu0 0.0
      %801 = vmatprep.subr.mxu0 0.0
      %802 = vmatpush2.msra.mxu0 0.0
      %803 = vmatprep.subr.mxu0 0.0
      %804 = vmatpush2.msra.mxu0 0.0
      %805 = vmatprep.subr.mxu0 0.0
      %806 = vmatpush2.msra.mxu0 0.0
      %807 = vmatprep.subr.mxu0 0.0
      %808 = vmatpush2.msra.mxu0 0.0
      %809 = vmatprep.subr.mxu0 0.0
      %810 = vmatpush2.msra.mxu0 0.0
      %811 = vmatprep.subr.mxu0 0.0
      %812 = vmatpush2.msra.mxu0 0.0
      %813 = vmatprep.subr.mxu0 0.0
      %814 = vmatpush2.msra.mxu0 0.0
      %815 = vmatprep.subr.mxu0 0.0
      %816 = vmatpush2.msra.mxu0 0.0
      %817 = vmatprep.subr.mxu0 0.0
      %818 = vmatpush2.msra.mxu0 0.0
      %819 = vmatprep.subr.mxu0 0.0
      %820 = vmatpush2.msra.mxu0 0.0
      %821 = vmatprep.subr.mxu0 0.0
      %822 = vmatpush2.msra.mxu0 0.0
      %823 = vmatprep.subr.mxu0 0.0
      %824 = vmatpush2.msra.mxu0 0.0
      %825 = vmatprep.mubr.f32.mxu0 0.0
      %826 = vmatmul.mubr.f32.gmra.mxu0 %v750
      %v827 = vpop.f32.mrf.mxu0
      %v828 = vadd.f32 %v746, %v827
      %v829 = vpop.f32.mrf.mxu0
      %830 = vmatprep.mubr.f32.mxu0 0.0
      %831 = vmatmul.mubr.f32.gmra.mxu0 %v753
      %v832 = vpop.f32.mrf.mxu0
      %v833 = vadd.f32 %v746, %v832
      %v834 = vpop.f32.mrf.mxu0
      %835 = vmatprep.mubr.f32.mxu0 0.0
      %836 = vmatmul.mubr.f32.gmra.mxu0 %v756
      %v837 = vpop.f32.mrf.mxu0
      %v838 = vadd.f32 %v746, %v837
      %v839 = vpop.f32.mrf.mxu0
      %840 = vmatprep.mubr.f32.mxu0 0.0
      %841 = vmatmul.mubr.f32.gmra.mxu0 %v759
      %v842 = vpop.f32.mrf.mxu0
      %v843 = vadd.f32 %v746, %v842
      %v844 = vpop.f32.mrf.mxu0
      %845 = vdwg.mxu0
      %v846 = vmax.f32 %v828, 0.0
      %v847 = vmax.f32 %v833, 0.0
      %v848 = vmax.f32 %v838, 0.0
      %v849 = vmax.f32 %v843, 0.0
      %v850 = vld [vmem:[%s5] sm:$0xff]
      %v851 = vld [vmem:[%s5 + $0x8] sm:$0xff]
      %v852 = vld [vmem:[%s5 + $0x10] sm:$0xff]
      %v853 = vld [vmem:[%s5 + $0x18] sm:$0xff]
      %v854 = vld [vmem:[%s6] sm:$0x1]
      %v856 = vlaneseq
      %v857 = vshrl.u32 %v856, 7
      %v858 = vsub.s32 0, %v857
      %v859 = vrot.slane %v854, %v858
      %v862 = vsel %vm748, %v846, 0
      %v865 = vsel %vm748, %v847, 0
      %v868 = vsel %vm748, %v848, 0
      %v871 = vsel %vm748, %v849, 0
      %873 = vmatprep.subr.mxu0 0.0
      %874 = vmatpush1.msra.mxu0 0.0
      %875 = vmatprep.subr.mxu0 0.0
      %876 = vmatpush1.msra.mxu0 0.0
      %877 = vmatprep.subr.mxu0 0.0
      %878 = vmatpush1.msra.mxu0 0.0
      %879 = vmatprep.subr.mxu0 0.0
      %880 = vmatpush1.msra.mxu0 0.0
      %881 = vmatprep.subr.mxu0 0.0
      %882 = vmatpush1.msra.mxu0 0.0
      %883 = vmatprep.subr.mxu0 0.0
      %884 = vmatpush1.msra.mxu0 0.0
      %885 = vmatprep.subr.mxu0 0.0
      %886 = vmatpush1.msra.mxu0 0.0
      %887 = vmatprep.subr.mxu0 0.0
      %888 = vmatpush1.msra.mxu0 0.0
      %889 = vmatprep.subr.mxu0 0.0
      %890 = vmatpush1.msra.mxu0 0.0
      %891 = vmatprep.subr.mxu0 0.0
      %892 = vmatpush1.msra.mxu0 0.0
      %893 = vmatprep.subr.mxu0 0.0
      %894 = vmatpush1.msra.mxu0 0.0
      %895 = vmatprep.subr.mxu0 0.0
      %896 = vmatpush1.msra.mxu0 0.0
      %897 = vmatprep.subr.mxu0 0.0
      %898 = vmatpush1.msra.mxu0 %v853
      %899 = vmatprep.subr.mxu0 0.0
      %900 = vmatpush1.msra.mxu0 %v852
      %901 = vmatprep.subr.mxu0 0.0
      %902 = vmatpush1.msra.mxu0 %v851
      %903 = vmatprep.subr.mxu0 0.0
      %904 = vmatpush1.msra.mxu0 %v850
      %905 = vmatprep.subr.mxu0 0.0
      %906 = vmatpush2.msra.mxu0 0.0
      %907 = vmatprep.subr.mxu0 0.0
      %908 = vmatpush2.msra.mxu0 0.0
      %909 = vmatprep.subr.mxu0 0.0
      %910 = vmatpush2.msra.mxu0 0.0
      %911 = vmatprep.subr.mxu0 0.0
      %912 = vmatpush2.msra.mxu0 0.0
      %913 = vmatprep.subr.mxu0 0.0
      %914 = vmatpush2.msra.mxu0 0.0
      %915 = vmatprep.subr.mxu0 0.0
      %916 = vmatpush2.msra.mxu0 0.0
      %917 = vmatprep.subr.mxu0 0.0
      %918 = vmatpush2.msra.mxu0 0.0
      %919 = vmatprep.subr.mxu0 0.0
      %920 = vmatpush2.msra.mxu0 0.0
      %921 = vmatprep.subr.mxu0 0.0
      %922 = vmatpush2.msra.mxu0 0.0
      %923 = vmatprep.subr.mxu0 0.0
      %924 = vmatpush2.msra.mxu0 0.0
      %925 = vmatprep.subr.mxu0 0.0
      %926 = vmatpush2.msra.mxu0 0.0
      %927 = vmatprep.subr.mxu0 0.0
      %928 = vmatpush2.msra.mxu0 0.0
      %929 = vmatprep.subr.mxu0 0.0
      %930 = vmatpush2.msra.mxu0 0.0
      %931 = vmatprep.subr.mxu0 0.0
      %932 = vmatpush2.msra.mxu0 0.0
      %933 = vmatprep.subr.mxu0 0.0
      %934 = vmatpush2.msra.mxu0 0.0
      %935 = vmatprep.subr.mxu0 0.0
      %936 = vmatpush2.msra.mxu0 0.0
      %937 = vmatprep.mubr.f32.mxu0 0.0
      %938 = vmatmul.mubr.f32.gmra.mxu0 %v862
      %v939 = vpop.f32.mrf.mxu0
      %v940 = vadd.f32 %v859, %v939
      %v941 = vpop.f32.mrf.mxu0
      %942 = vmatprep.mubr.f32.mxu0 0.0
      %943 = vmatmul.mubr.f32.gmra.mxu0 %v865
      %v944 = vpop.f32.mrf.mxu0
      %v945 = vadd.f32 %v859, %v944
      %v946 = vpop.f32.mrf.mxu0
      %947 = vmatprep.mubr.f32.mxu0 0.0
      %948 = vmatmul.mubr.f32.gmra.mxu0 %v868
      %v949 = vpop.f32.mrf.mxu0
      %v950 = vadd.f32 %v859, %v949
      %v951 = vpop.f32.mrf.mxu0
      %952 = vmatprep.mubr.f32.mxu0 0.0
      %953 = vmatmul.mubr.f32.gmra.mxu0 %v871
      %v954 = vpop.f32.mrf.mxu0
      %v955 = vadd.f32 %v859, %v954
      %v956 = vpop.f32.mrf.mxu0
      %957 = vdwg.mxu0
      %v958 = vmax.f32 %v940, 0.0
      %v959 = vmax.f32 %v945, 0.0
      %v960 = vmax.f32 %v950, 0.0
      %v961 = vmax.f32 %v955, 0.0
      %v962 = vld [vmem:[%s12] sm:$0xff]
      %v964 = vsel %vm748, %v962, 0
      %966 = vmatprep.subr.mxu0 0.0
      %967 = vmatpush1.msra.mxu0 0.0
      %968 = vmatprep.subr.mxu0 0.0
      %969 = vmatpush1.msra.mxu0 0.0
      %970 = vmatprep.subr.mxu0 0.0
      %971 = vmatpush1.msra.mxu0 0.0
      %972 = vmatprep.subr.mxu0 0.0
      %973 = vmatpush1.msra.mxu0 0.0
      %974 = vmatprep.subr.mxu0 0.0
      %975 = vmatpush1.msra.mxu0 0.0
      %976 = vmatprep.subr.mxu0 0.0
      %977 = vmatpush1.msra.mxu0 0.0
      %978 = vmatprep.subr.mxu0 0.0
      %979 = vmatpush1.msra.mxu0 0.0
      %980 = vmatprep.subr.mxu0 0.0
      %981 = vmatpush1.msra.mxu0 0.0
      %982 = vmatprep.subr.mxu0 0.0
      %983 = vmatpush1.msra.mxu0 0.0
      %984 = vmatprep.subr.mxu0 0.0
      %985 = vmatpush1.msra.mxu0 0.0
      %986 = vmatprep.subr.mxu0 0.0
      %987 = vmatpush1.msra.mxu0 0.0
      %988 = vmatprep.subr.mxu0 0.0
      %989 = vmatpush1.msra.mxu0 0.0
      %990 = vmatprep.subr.mxu0 0.0
      %991 = vmatpush1.msra.mxu0 %v961
      %992 = vmatprep.subr.mxu0 0.0
      %993 = vmatpush1.msra.mxu0 %v960
      %994 = vmatprep.subr.mxu0 0.0
      %995 = vmatpush1.msra.mxu0 %v959
      %996 = vmatprep.subr.mxu0 0.0
      %997 = vmatpush1.msra.mxu0 %v958
      %998 = vmatprep.subr.mxu0 0.0
      %999 = vmatpush2.msra.mxu0 0.0
      %1000 = vmatprep.subr.mxu0 0.0
      %1001 = vmatpush2.msra.mxu0 0.0
      %1002 = vmatprep.subr.mxu0 0.0
      %1003 = vmatpush2.msra.mxu0 0.0
      %1004 = vmatprep.subr.mxu0 0.0
      %1005 = vmatpush2.msra.mxu0 0.0
      %1006 = vmatprep.subr.mxu0 0.0
      %1007 = vmatpush2.msra.mxu0 0.0
      %1008 = vmatprep.subr.mxu0 0.0
      %1009 = vmatpush2.msra.mxu0 0.0
      %1010 = vmatprep.subr.mxu0 0.0
      %1011 = vmatpush2.msra.mxu0 0.0
      %1012 = vmatprep.subr.mxu0 0.0
      %1013 = vmatpush2.msra.mxu0 0.0
      %1014 = vmatprep.subr.mxu0 0.0
      %1015 = vmatpush2.msra.mxu0 0.0
      %1016 = vmatprep.subr.mxu0 0.0
      %1017 = vmatpush2.msra.mxu0 0.0
      %1018 = vmatprep.subr.mxu0 0.0
      %1019 = vmatpush2.msra.mxu0 0.0
      %1020 = vmatprep.subr.mxu0 0.0
      %1021 = vmatpush2.msra.mxu0 0.0
      %1022 = vmatprep.subr.mxu0 0.0
      %1023 = vmatpush2.msra.mxu0 0.0
      %1024 = vmatprep.subr.mxu0 0.0
      %1025 = vmatpush2.msra.mxu0 0.0
      %1026 = vmatprep.subr.mxu0 0.0
      %1027 = vmatpush2.msra.mxu0 0.0
      %1028 = vmatprep.subr.mxu0 0.0
      %1029 = vmatpush2.msra.mxu0 0.0
      %1030 = vmatprep.mubr.f32.mxu0 0.0
      %1031 = vmatmul.mubr.f32.gmra.mxu0 %v964
      %v1032 = vpop.f32.mrf.mxu0
      %v1033 = vadd.f32 0.0, %v1032
      %v1034 = vpop.f32.mrf.mxu0
      %1035 = vdwg.mxu0
      %v1036 = vld [vmem:[%s14] sm:$0xff]
      %v1037 = vld [vmem:[%s14 + $0x8] sm:$0xff]
      %v1038 = vld [vmem:[%s14 + $0x10] sm:$0xff]
      %v1039 = vld [vmem:[%s14 + $0x18] sm:$0xff]
      %v1041 = vsel %vm748, %v1033, 0
      %1043 = vmatprep.subr.mxu0 0.0
      %1044 = vmatpush1.msra.mxu0 0.0
      %1045 = vmatprep.subr.mxu0 0.0
      %1046 = vmatpush1.msra.mxu0 0.0
      %1047 = vmatprep.subr.mxu0 0.0
      %1048 = vmatpush1.msra.mxu0 0.0
      %1049 = vmatprep.subr.mxu0 0.0
      %1050 = vmatpush1.msra.mxu0 0.0
      %1051 = vmatprep.subr.mxu0 0.0
      %1052 = vmatpush1.msra.mxu0 0.0
      %1053 = vmatprep.subr.mxu0 0.0
      %1054 = vmatpush1.msra.mxu0 0.0
      %1055 = vmatprep.subr.mxu0 0.0
      %1056 = vmatpush1.msra.mxu0 0.0
      %1057 = vmatprep.subr.mxu0 0.0
      %1058 = vmatpush1.msra.mxu0 0.0
      %1059 = vmatprep.subr.mxu0 0.0
      %1060 = vmatpush1.msra.mxu0 0.0
      %1061 = vmatprep.subr.mxu0 0.0
      %1062 = vmatpush1.msra.mxu0 0.0
      %1063 = vmatprep.subr.mxu0 0.0
      %1064 = vmatpush1.msra.mxu0 0.0
      %1065 = vmatprep.subr.mxu0 0.0
      %1066 = vmatpush1.msra.mxu0 0.0
      %1067 = vmatprep.subr.mxu0 0.0
      %1068 = vmatpush1.msra.mxu0 %v1039
      %1069 = vmatprep.subr.mxu0 0.0
      %1070 = vmatpush1.msra.mxu0 %v1038
      %1071 = vmatprep.subr.mxu0 0.0
      %1072 = vmatpush1.msra.mxu0 %v1037
      %1073 = vmatprep.subr.mxu0 0.0
      %1074 = vmatpush1.msra.mxu0 %v1036
      %1075 = vmatprep.subr.mxu0 0.0
      %1076 = vmatpush2.msra.mxu0 0.0
      %1077 = vmatprep.subr.mxu0 0.0
      %1078 = vmatpush2.msra.mxu0 0.0
      %1079 = vmatprep.subr.mxu0 0.0
      %1080 = vmatpush2.msra.mxu0 0.0
      %1081 = vmatprep.subr.mxu0 0.0
      %1082 = vmatpush2.msra.mxu0 0.0
      %1083 = vmatprep.subr.mxu0 0.0
      %1084 = vmatpush2.msra.mxu0 0.0
      %1085 = vmatprep.subr.mxu0 0.0
      %1086 = vmatpush2.msra.mxu0 0.0
      %1087 = vmatprep.subr.mxu0 0.0
      %1088 = vmatpush2.msra.mxu0 0.0
      %1089 = vmatprep.subr.mxu0 0.0
      %1090 = vmatpush2.msra.mxu0 0.0
      %1091 = vmatprep.subr.mxu0 0.0
      %1092 = vmatpush2.msra.mxu0 0.0
      %1093 = vmatprep.subr.mxu0 0.0
      %1094 = vmatpush2.msra.mxu0 0.0
      %1095 = vmatprep.subr.mxu0 0.0
      %1096 = vmatpush2.msra.mxu0 0.0
      %1097 = vmatprep.subr.mxu0 0.0
      %1098 = vmatpush2.msra.mxu0 0.0
      %1099 = vmatprep.subr.mxu0 0.0
      %1100 = vmatpush2.msra.mxu0 0.0
      %1101 = vmatprep.subr.mxu0 0.0
      %1102 = vmatpush2.msra.mxu0 0.0
      %1103 = vmatprep.subr.mxu0 0.0
      %1104 = vmatpush2.msra.mxu0 0.0
      %1105 = vmatprep.subr.mxu0 0.0
      %1106 = vmatpush2.msra.mxu0 0.0
      %1107 = vmatprep.mubr.f32.mxu0 0.0
      %1108 = vmatmul.mubr.f32.gmra.mxu0 %v1041
      %v1109 = vpop.f32.mrf.mxu0
      %v1110 = vadd.f32 0.0, %v1109
      %v1111 = vpop.f32.mrf.mxu0
      %1112 = vdwg.mxu0
      %v1114 = vsel %vm748, %v629, 0
      %1116 = vmatprep.subr.mxu0 0.0
      %1117 = vmatpush1.msra.mxu0 0.0
      %1118 = vmatprep.subr.mxu0 0.0
      %1119 = vmatpush1.msra.mxu0 0.0
      %1120 = vmatprep.subr.mxu0 0.0
      %1121 = vmatpush1.msra.mxu0 0.0
      %1122 = vmatprep.subr.mxu0 0.0
      %1123 = vmatpush1.msra.mxu0 0.0
      %1124 = vmatprep.subr.mxu0 0.0
      %1125 = vmatpush1.msra.mxu0 0.0
      %1126 = vmatprep.subr.mxu0 0.0
      %1127 = vmatpush1.msra.mxu0 0.0
      %1128 = vmatprep.subr.mxu0 0.0
      %1129 = vmatpush1.msra.mxu0 0.0
      %1130 = vmatprep.subr.mxu0 0.0
      %1131 = vmatpush1.msra.mxu0 0.0
      %1132 = vmatprep.subr.mxu0 0.0
      %1133 = vmatpush1.msra.mxu0 0.0
      %1134 = vmatprep.subr.mxu0 0.0
      %1135 = vmatpush1.msra.mxu0 0.0
      %1136 = vmatprep.subr.mxu0 0.0
      %1137 = vmatpush1.msra.mxu0 0.0
      %1138 = vmatprep.subr.mxu0 0.0
      %1139 = vmatpush1.msra.mxu0 0.0
      %1140 = vmatprep.subr.mxu0 0.0
      %1141 = vmatpush1.msra.mxu0 %v635
      %1142 = vmatprep.subr.mxu0 0.0
      %1143 = vmatpush1.msra.mxu0 %v634
      %1144 = vmatprep.subr.mxu0 0.0
      %1145 = vmatpush1.msra.mxu0 %v633
      %1146 = vmatprep.subr.mxu0 0.0
      %1147 = vmatpush1.msra.mxu0 %v632
      %1148 = vmatprep.subr.mxu0 0.0
      %1149 = vmatpush2.msra.mxu0 0.0
      %1150 = vmatprep.subr.mxu0 0.0
      %1151 = vmatpush2.msra.mxu0 0.0
      %1152 = vmatprep.subr.mxu0 0.0
      %1153 = vmatpush2.msra.mxu0 0.0
      %1154 = vmatprep.subr.mxu0 0.0
      %1155 = vmatpush2.msra.mxu0 0.0
      %1156 = vmatprep.subr.mxu0 0.0
      %1157 = vmatpush2.msra.mxu0 0.0
      %1158 = vmatprep.subr.mxu0 0.0
      %1159 = vmatpush2.msra.mxu0 0.0
      %1160 = vmatprep.subr.mxu0 0.0
      %1161 = vmatpush2.msra.mxu0 0.0
      %1162 = vmatprep.subr.mxu0 0.0
      %1163 = vmatpush2.msra.mxu0 0.0
      %1164 = vmatprep.subr.mxu0 0.0
      %1165 = vmatpush2.msra.mxu0 0.0
      %1166 = vmatprep.subr.mxu0 0.0
      %1167 = vmatpush2.msra.mxu0 0.0
      %1168 = vmatprep.subr.mxu0 0.0
      %1169 = vmatpush2.msra.mxu0 0.0
      %1170 = vmatprep.subr.mxu0 0.0
      %1171 = vmatpush2.msra.mxu0 0.0
      %1172 = vmatprep.subr.mxu0 0.0
      %1173 = vmatpush2.msra.mxu0 0.0
      %1174 = vmatprep.subr.mxu0 0.0
      %1175 = vmatpush2.msra.mxu0 0.0
      %1176 = vmatprep.subr.mxu0 0.0
      %1177 = vmatpush2.msra.mxu0 0.0
      %1178 = vmatprep.subr.mxu0 0.0
      %1179 = vmatpush2.msra.mxu0 0.0
      %1180 = vmatprep.mubr.f32.mxu0 0.0
      %1181 = vmatmul.mubr.f32.gmra.mxu0 %v1114
      %v1182 = vpop.f32.mrf.mxu0
      %v1183 = vadd.f32 %v1110, %v1182
      %v1184 = vpop.f32.mrf.mxu0
      %1185 = vdwg.mxu0
      %v1186 = vld [vmem:[%s2] sm:$0xff]
      %v1188 = vsel %vm748, %v1186, 0
      %1190 = vmatprep.subr.mxu0 0.0
      %1191 = vmatpush1.msra.mxu0 0.0
      %1192 = vmatprep.subr.mxu0 0.0
      %1193 = vmatpush1.msra.mxu0 0.0
      %1194 = vmatprep.subr.mxu0 0.0
      %1195 = vmatpush1.msra.mxu0 0.0
      %1196 = vmatprep.subr.mxu0 0.0
      %1197 = vmatpush1.msra.mxu0 0.0
      %1198 = vmatprep.subr.mxu0 0.0
      %1199 = vmatpush1.msra.mxu0 0.0
      %1200 = vmatprep.subr.mxu0 0.0
      %1201 = vmatpush1.msra.mxu0 0.0
      %1202 = vmatprep.subr.mxu0 0.0
      %1203 = vmatpush1.msra.mxu0 0.0
      %1204 = vmatprep.subr.mxu0 0.0
      %1205 = vmatpush1.msra.mxu0 0.0
      %1206 = vmatprep.subr.mxu0 0.0
      %1207 = vmatpush1.msra.mxu0 0.0
      %1208 = vmatprep.subr.mxu0 0.0
      %1209 = vmatpush1.msra.mxu0 0.0
      %1210 = vmatprep.subr.mxu0 0.0
      %1211 = vmatpush1.msra.mxu0 0.0
      %1212 = vmatprep.subr.mxu0 0.0
      %1213 = vmatpush1.msra.mxu0 0.0
      %1214 = vmatprep.subr.mxu0 0.0
      %1215 = vmatpush1.msra.mxu0 %v961
      %1216 = vmatprep.subr.mxu0 0.0
      %1217 = vmatpush1.msra.mxu0 %v960
      %1218 = vmatprep.subr.mxu0 0.0
      %1219 = vmatpush1.msra.mxu0 %v959
      %1220 = vmatprep.subr.mxu0 0.0
      %1221 = vmatpush1.msra.mxu0 %v958
      %1222 = vmatprep.subr.mxu0 0.0
      %1223 = vmatpush2.msra.mxu0 0.0
      %1224 = vmatprep.subr.mxu0 0.0
      %1225 = vmatpush2.msra.mxu0 0.0
      %1226 = vmatprep.subr.mxu0 0.0
      %1227 = vmatpush2.msra.mxu0 0.0
      %1228 = vmatprep.subr.mxu0 0.0
      %1229 = vmatpush2.msra.mxu0 0.0
      %1230 = vmatprep.subr.mxu0 0.0
      %1231 = vmatpush2.msra.mxu0 0.0
      %1232 = vmatprep.subr.mxu0 0.0
      %1233 = vmatpush2.msra.mxu0 0.0
      %1234 = vmatprep.subr.mxu0 0.0
      %1235 = vmatpush2.msra.mxu0 0.0
      %1236 = vmatprep.subr.mxu0 0.0
      %1237 = vmatpush2.msra.mxu0 0.0
      %1238 = vmatprep.subr.mxu0 0.0
      %1239 = vmatpush2.msra.mxu0 0.0
      %1240 = vmatprep.subr.mxu0 0.0
      %1241 = vmatpush2.msra.mxu0 0.0
      %1242 = vmatprep.subr.mxu0 0.0
      %1243 = vmatpush2.msra.mxu0 0.0
      %1244 = vmatprep.subr.mxu0 0.0
      %1245 = vmatpush2.msra.mxu0 0.0
      %1246 = vmatprep.subr.mxu0 0.0
      %1247 = vmatpush2.msra.mxu0 0.0
      %1248 = vmatprep.subr.mxu0 0.0
      %1249 = vmatpush2.msra.mxu0 0.0
      %1250 = vmatprep.subr.mxu0 0.0
      %1251 = vmatpush2.msra.mxu0 0.0
      %1252 = vmatprep.subr.mxu0 0.0
      %1253 = vmatpush2.msra.mxu0 0.0
      %1254 = vmatprep.mubr.f32.mxu0 0.0
      %1255 = vmatmul.mubr.f32.gmra.mxu0 %v1188
      %v1256 = vpop.f32.mrf.mxu0
      %v1257 = vadd.f32 0.0, %v1256
      %v1258 = vpop.f32.mrf.mxu0
      %1259 = vdwg.mxu0
      %v1260 = vld [vmem:[%s7] sm:$0xff]
      %v1261 = vld [vmem:[%s7 + $0x8] sm:$0xff]
      %v1262 = vld [vmem:[%s7 + $0x10] sm:$0xff]
      %v1263 = vld [vmem:[%s7 + $0x18] sm:$0xff]
      %v1264 = vld [vmem:[%s8] sm:$0x1]
      %v1266 = vlaneseq
      %v1267 = vshrl.u32 %v1266, 7
      %v1268 = vsub.s32 0, %v1267
      %v1269 = vrot.slane %v1264, %v1268
      %v1272 = vsel %vm748, %v1257, 0
      %1274 = vmatprep.subr.mxu0 0.0
      %1275 = vmatpush1.msra.mxu0 0.0
      %1276 = vmatprep.subr.mxu0 0.0
      %1277 = vmatpush1.msra.mxu0 0.0
      %1278 = vmatprep.subr.mxu0 0.0
      %1279 = vmatpush1.msra.mxu0 0.0
      %1280 = vmatprep.subr.mxu0 0.0
      %1281 = vmatpush1.msra.mxu0 0.0
      %1282 = vmatprep.subr.mxu0 0.0
      %1283 = vmatpush1.msra.mxu0 0.0
      %1284 = vmatprep.subr.mxu0 0.0
      %1285 = vmatpush1.msra.mxu0 0.0
      %1286 = vmatprep.subr.mxu0 0.0
      %1287 = vmatpush1.msra.mxu0 0.0
      %1288 = vmatprep.subr.mxu0 0.0
      %1289 = vmatpush1.msra.mxu0 0.0
      %1290 = vmatprep.subr.mxu0 0.0
      %1291 = vmatpush1.msra.mxu0 0.0
      %1292 = vmatprep.subr.mxu0 0.0
      %1293 = vmatpush1.msra.mxu0 0.0
      %1294 = vmatprep.subr.mxu0 0.0
      %1295 = vmatpush1.msra.mxu0 0.0
      %1296 = vmatprep.subr.mxu0 0.0
      %1297 = vmatpush1.msra.mxu0 0.0
      %1298 = vmatprep.subr.mxu0 0.0
      %1299 = vmatpush1.msra.mxu0 %v1263
      %1300 = vmatprep.subr.mxu0 0.0
      %1301 = vmatpush1.msra.mxu0 %v1262
      %1302 = vmatprep.subr.mxu0 0.0
      %1303 = vmatpush1.msra.mxu0 %v1261
      %1304 = vmatprep.subr.mxu0 0.0
      %1305 = vmatpush1.msra.mxu0 %v1260
      %1306 = vmatprep.subr.mxu0 0.0
      %1307 = vmatpush2.msra.mxu0 0.0
      %1308 = vmatprep.subr.mxu0 0.0
      %1309 = vmatpush2.msra.mxu0 0.0
      %1310 = vmatprep.subr.mxu0 0.0
      %1311 = vmatpush2.msra.mxu0 0.0
      %1312 = vmatprep.subr.mxu0 0.0
      %1313 = vmatpush2.msra.mxu0 0.0
      %1314 = vmatprep.subr.mxu0 0.0
      %1315 = vmatpush2.msra.mxu0 0.0
      %1316 = vmatprep.subr.mxu0 0.0
      %1317 = vmatpush2.msra.mxu0 0.0
      %1318 = vmatprep.subr.mxu0 0.0
      %1319 = vmatpush2.msra.mxu0 0.0
      %1320 = vmatprep.subr.mxu0 0.0
      %1321 = vmatpush2.msra.mxu0 0.0
      %1322 = vmatprep.subr.mxu0 0.0
      %1323 = vmatpush2.msra.mxu0 0.0
      %1324 = vmatprep.subr.mxu0 0.0
      %1325 = vmatpush2.msra.mxu0 0.0
      %1326 = vmatprep.subr.mxu0 0.0
      %1327 = vmatpush2.msra.mxu0 0.0
      %1328 = vmatprep.subr.mxu0 0.0
      %1329 = vmatpush2.msra.mxu0 0.0
      %1330 = vmatprep.subr.mxu0 0.0
      %1331 = vmatpush2.msra.mxu0 0.0
      %1332 = vmatprep.subr.mxu0 0.0
      %1333 = vmatpush2.msra.mxu0 0.0
      %1334 = vmatprep.subr.mxu0 0.0
      %1335 = vmatpush2.msra.mxu0 0.0
      %1336 = vmatprep.subr.mxu0 0.0
      %1337 = vmatpush2.msra.mxu0 0.0
      %1338 = vmatprep.mubr.f32.mxu0 0.0
      %1339 = vmatmul.mubr.f32.gmra.mxu0 %v1272
      %v1340 = vpop.f32.mrf.mxu0
      %v1341 = vadd.f32 %v1269, %v1340
      %v1342 = vpop.f32.mrf.mxu0
      %1343 = vdwg.mxu0
      %v1344 = vmax.f32 %v1341, 0.0
      %v1345 = vld [vmem:[%s9] sm:$0xff]
      %v1346 = vld [vmem:[%s9 + $0x8] sm:$0xff]
      %v1347 = vld [vmem:[%s9 + $0x10] sm:$0xff]
      %v1348 = vld [vmem:[%s9 + $0x18] sm:$0xff]
      %v1349 = vld [vmem:[%s10] sm:$0x1]
      %v1351 = vlaneseq
      %v1352 = vshrl.u32 %v1351, 7
      %v1353 = vsub.s32 0, %v1352
      %v1354 = vrot.slane %v1349, %v1353
      %v1357 = vsel %vm748, %v1344, 0
      %1359 = vmatprep.subr.mxu0 0.0
      %1360 = vmatpush1.msra.mxu0 0.0
      %1361 = vmatprep.subr.mxu0 0.0
      %1362 = vmatpush1.msra.mxu0 0.0
      %1363 = vmatprep.subr.mxu0 0.0
      %1364 = vmatpush1.msra.mxu0 0.0
      %1365 = vmatprep.subr.mxu0 0.0
      %1366 = vmatpush1.msra.mxu0 0.0
      %1367 = vmatprep.subr.mxu0 0.0
      %1368 = vmatpush1.msra.mxu0 0.0
      %1369 = vmatprep.subr.mxu0 0.0
      %1370 = vmatpush1.msra.mxu0 0.0
      %1371 = vmatprep.subr.mxu0 0.0
      %1372 = vmatpush1.msra.mxu0 0.0
      %1373 = vmatprep.subr.mxu0 0.0
      %1374 = vmatpush1.msra.mxu0 0.0
      %1375 = vmatprep.subr.mxu0 0.0
      %1376 = vmatpush1.msra.mxu0 0.0
      %1377 = vmatprep.subr.mxu0 0.0
      %1378 = vmatpush1.msra.mxu0 0.0
      %1379 = vmatprep.subr.mxu0 0.0
      %1380 = vmatpush1.msra.mxu0 0.0
      %1381 = vmatprep.subr.mxu0 0.0
      %1382 = vmatpush1.msra.mxu0 0.0
      %1383 = vmatprep.subr.mxu0 0.0
      %1384 = vmatpush1.msra.mxu0 %v1348
      %1385 = vmatprep.subr.mxu0 0.0
      %1386 = vmatpush1.msra.mxu0 %v1347
      %1387 = vmatprep.subr.mxu0 0.0
      %1388 = vmatpush1.msra.mxu0 %v1346
      %1389 = vmatprep.subr.mxu0 0.0
      %1390 = vmatpush1.msra.mxu0 %v1345
      %1391 = vmatprep.subr.mxu0 0.0
      %1392 = vmatpush2.msra.mxu0 0.0
      %1393 = vmatprep.subr.mxu0 0.0
      %1394 = vmatpush2.msra.mxu0 0.0
      %1395 = vmatprep.subr.mxu0 0.0
      %1396 = vmatpush2.msra.mxu0 0.0
      %1397 = vmatprep.subr.mxu0 0.0
      %1398 = vmatpush2.msra.mxu0 0.0
      %1399 = vmatprep.subr.mxu0 0.0
      %1400 = vmatpush2.msra.mxu0 0.0
      %1401 = vmatprep.subr.mxu0 0.0
      %1402 = vmatpush2.msra.mxu0 0.0
      %1403 = vmatprep.subr.mxu0 0.0
      %1404 = vmatpush2.msra.mxu0 0.0
      %1405 = vmatprep.subr.mxu0 0.0
      %1406 = vmatpush2.msra.mxu0 0.0
      %1407 = vmatprep.subr.mxu0 0.0
      %1408 = vmatpush2.msra.mxu0 0.0
      %1409 = vmatprep.subr.mxu0 0.0
      %1410 = vmatpush2.msra.mxu0 0.0
      %1411 = vmatprep.subr.mxu0 0.0
      %1412 = vmatpush2.msra.mxu0 0.0
      %1413 = vmatprep.subr.mxu0 0.0
      %1414 = vmatpush2.msra.mxu0 0.0
      %1415 = vmatprep.subr.mxu0 0.0
      %1416 = vmatpush2.msra.mxu0 0.0
      %1417 = vmatprep.subr.mxu0 0.0
      %1418 = vmatpush2.msra.mxu0 0.0
      %1419 = vmatprep.subr.mxu0 0.0
      %1420 = vmatpush2.msra.mxu0 0.0
      %1421 = vmatprep.subr.mxu0 0.0
      %1422 = vmatpush2.msra.mxu0 0.0
      %1423 = vmatprep.mubr.f32.mxu0 0.0
      %1424 = vmatmul.mubr.f32.gmra.mxu0 %v1357
      %v1425 = vpop.f32.mrf.mxu0
      %v1426 = vadd.f32 %v1354, %v1425
      %v1427 = vpop.f32.mrf.mxu0
      %1428 = vdwg.mxu0
      %v1429 = vmax.f32 %v1426, 0.0
      %v1430 = vld [vmem:[%s15] sm:$0xff]
      %v1431 = vld [vmem:[%s15 + $0x8] sm:$0xff]
      %v1432 = vld [vmem:[%s15 + $0x10] sm:$0xff]
      %v1433 = vld [vmem:[%s15 + $0x18] sm:$0xff]
      %v1435 = vsel %vm748, %v1429, 0
      %1437 = vmatprep.subr.mxu0 0.0
      %1438 = vmatpush1.msra.mxu0 0.0
      %1439 = vmatprep.subr.mxu0 0.0
      %1440 = vmatpush1.msra.mxu0 0.0
      %1441 = vmatprep.subr.mxu0 0.0
      %1442 = vmatpush1.msra.mxu0 0.0
      %1443 = vmatprep.subr.mxu0 0.0
      %1444 = vmatpush1.msra.mxu0 0.0
      %1445 = vmatprep.subr.mxu0 0.0
      %1446 = vmatpush1.msra.mxu0 0.0
      %1447 = vmatprep.subr.mxu0 0.0
      %1448 = vmatpush1.msra.mxu0 0.0
      %1449 = vmatprep.subr.mxu0 0.0
      %1450 = vmatpush1.msra.mxu0 0.0
      %1451 = vmatprep.subr.mxu0 0.0
      %1452 = vmatpush1.msra.mxu0 0.0
      %1453 = vmatprep.subr.mxu0 0.0
      %1454 = vmatpush1.msra.mxu0 0.0
      %1455 = vmatprep.subr.mxu0 0.0
      %1456 = vmatpush1.msra.mxu0 0.0
      %1457 = vmatprep.subr.mxu0 0.0
      %1458 = vmatpush1.msra.mxu0 0.0
      %1459 = vmatprep.subr.mxu0 0.0
      %1460 = vmatpush1.msra.mxu0 0.0
      %1461 = vmatprep.subr.mxu0 0.0
      %1462 = vmatpush1.msra.mxu0 %v1433
      %1463 = vmatprep.subr.mxu0 0.0
      %1464 = vmatpush1.msra.mxu0 %v1432
      %1465 = vmatprep.subr.mxu0 0.0
      %1466 = vmatpush1.msra.mxu0 %v1431
      %1467 = vmatprep.subr.mxu0 0.0
      %1468 = vmatpush1.msra.mxu0 %v1430
      %1469 = vmatprep.subr.mxu0 0.0
      %1470 = vmatpush2.msra.mxu0 0.0
      %1471 = vmatprep.subr.mxu0 0.0
      %1472 = vmatpush2.msra.mxu0 0.0
      %1473 = vmatprep.subr.mxu0 0.0
      %1474 = vmatpush2.msra.mxu0 0.0
      %1475 = vmatprep.subr.mxu0 0.0
      %1476 = vmatpush2.msra.mxu0 0.0
      %1477 = vmatprep.subr.mxu0 0.0
      %1478 = vmatpush2.msra.mxu0 0.0
      %1479 = vmatprep.subr.mxu0 0.0
      %1480 = vmatpush2.msra.mxu0 0.0
      %1481 = vmatprep.subr.mxu0 0.0
      %1482 = vmatpush2.msra.mxu0 0.0
      %1483 = vmatprep.subr.mxu0 0.0
      %1484 = vmatpush2.msra.mxu0 0.0
      %1485 = vmatprep.subr.mxu0 0.0
      %1486 = vmatpush2.msra.mxu0 0.0
      %1487 = vmatprep.subr.mxu0 0.0
      %1488 = vmatpush2.msra.mxu0 0.0
      %1489 = vmatprep.subr.mxu0 0.0
      %1490 = vmatpush2.msra.mxu0 0.0
      %1491 = vmatprep.subr.mxu0 0.0
      %1492 = vmatpush2.msra.mxu0 0.0
      %1493 = vmatprep.subr.mxu0 0.0
      %1494 = vmatpush2.msra.mxu0 0.0
      %1495 = vmatprep.subr.mxu0 0.0
      %1496 = vmatpush2.msra.mxu0 0.0
      %1497 = vmatprep.subr.mxu0 0.0
      %1498 = vmatpush2.msra.mxu0 0.0
      %1499 = vmatprep.subr.mxu0 0.0
      %1500 = vmatpush2.msra.mxu0 0.0
      %1501 = vmatprep.mubr.f32.mxu0 0.0
      %1502 = vmatmul.mubr.f32.gmra.mxu0 %v1435
      %v1503 = vpop.f32.mrf.mxu0
      %v1504 = vadd.f32 0.0, %v1503
      %v1505 = vpop.f32.mrf.mxu0
      %1506 = vdwg.mxu0
      %v1507 = vadd.f32 %v1183, %v1504
      %v1508 = vld [vmem:[%s16] sm:$0x1]
      %v1510 = vlaneseq
      %v1511 = vshrl.u32 %v1510, 7
      %v1512 = vsub.s32 0, %v1511
      %v1513 = vrot.slane %v1508, %v1512
      %v1515 = vadd.f32 %v1507, %v1513
      %vm1516 = vcmask 64512
      %1517 = vst.msk [vmem:[%s548] sm:$0xff] %vm1516, %v1515
      %p1518 = scmp.lt.s32.totalorder %s28, 1
      %s1519 = scalar_select %p1518, %s28, 1
      %s1520 = smul.addr %s1519, 8
      %s1521 = scalar_lea.vmem %s17, %s1520
      // Predicated region
      $region89: #{tin_forward.1} parent=87 // pred_check
        %p1522 = pneg %p408
      $region90: #{tin_forward.1} parent=87 // pred_check_branch
        %1524 = sbr.rel (%p1522) target = $region92
      $region91: #{tin_forward.1} parent=87 // pred_region
        _
      $region92: #{tin_forward.1} parent=87 // pred_fallthru
        _
    $region88: #{tin_forward.1} parent=5 // pred_fallthru
      _
    %p1525 = scmp.le.s32.totalorder 2, %s23
    // Predicated region
    $region93: #{tin_forward.1} parent=5 // pred_check
      %p1526 = pneg %p1525
    $region94: #{tin_forward.1} parent=5 // pred_check_branch
      %1528 = sbr.rel (%p1526) target = $region96
    $region95: #{tin_forward.1} parent=5 // pred_region
      %s1529 = ssub.s32 %s23, 2
      // Predicated region
      $region97: #{tin_forward.1} parent=95 // pred_check
        %p1530 = pneg %p414
      $region98: #{tin_forward.1} parent=95 // pred_check_branch
        %1532 = sbr.rel (%p1530) target = $region100
      $region99: #{tin_forward.1} parent=95 // pred_region
        %p1533 = scmp.lt.s32.totalorder %s29, 1
        %s1534 = scalar_select %p1533, %s29, 1
        %s1535 = smul.addr %s1534, 8
        %s1536 = scalar_lea.vmem %s17, %s1535
      $region100: #{tin_forward.1} parent=95 // pred_fallthru
        _
    $region96: #{tin_forward.1} parent=5 // pred_fallthru
      _
  $region6: #{tin_forward.1} parent=0 // loop_footer
    %s27 = sadd.s32 1, %s23
  $region7: #{tin_forward.1} parent=0 // loop_footer_branch
    %22 = sbr.rel target = $region3
  $region8: #{tin_forward.1} parent=0 // loop_exit
    _

</llo_original>
